<compile_context>
chip_gen: v5e
topology: v5e:2x2
jax: 0.10.0
libtpu: 0.0.40
codegen_flags: <defaults>
</compile_context>

<pallas_src>
import functools

import jax
import jax.numpy as jnp
from jax import lax
from jax.experimental import pallas as pl
from jax.experimental.pallas import tpu as pltpu

EPS = 1e-5          # PyTorch BatchNorm1d default eps
HALO = 8            # >= 3+2+1 rows needed by the chained 7/5/3 convs
LANES = 128


def _round_up(x, m):
    return (x + m - 1) // m * m


# ----------------------------------------------------------------------------
# Pallas kernel
# ----------------------------------------------------------------------------
def _resblock_kernel(xl_ref, xc_ref, xr_ref,
                     w1_ref, s1_ref, b1_ref,
                     w2_ref, s2_ref, b2_ref,
                     w3_ref, s3_ref, b3_ref,
                     *rest, conv_shortcut, seq_len, ks):
    if conv_shortcut:
        wsc_ref, ssc_ref, bsc_ref, o_ref, slab_ref, im_ref = rest
    else:
        o_ref, slab_ref, im_ref = rest

    k1, k2, k3 = ks
    t = pl.program_id(1)
    nt = pl.num_programs(1)
    tl = xc_ref.shape[1]
    hp = xl_ref.shape[1]            # == HALO
    cip = xc_ref.shape[2]
    cop = o_ref.shape[2]
    n_slab = tl + 2 * hp
    base = t * tl - hp              # sequence position of slab row 0

    # --- assemble the haloed bf16 input slab once in VMEM --------------------
    # slab row i holds sequence row base + i; halo rows outside the valid
    # sequence are zeroed (the clamped halo fetches at the edges are masked).
    slab_ref[0:hp, :] = jnp.where(t > 0, xl_ref[0], jnp.zeros_like(xl_ref[0]))
    slab_ref[hp:hp + tl, :] = xc_ref[0]
    slab_ref[hp + tl:n_slab, :] = jnp.where(t < nt - 1, xr_ref[0],
                                            jnp.zeros_like(xr_ref[0]))

    def conv_im2col(read_rows, n_in, k_taps, cin, w_ref):
        """Valid 1-D conv as a single MXU matmul (contraction = k_taps*cin).

        Tap k of the im2col lhs occupies lane-aligned columns
        [k*cin, (k+1)*cin); w_ref holds the matching tap-stacked weight."""
        n_out = n_in - k_taps + 1
        for k in range(k_taps):                      # static unroll, K <= 7
            im_ref[0:n_out, k * cin:(k + 1) * cin] = read_rows(k, n_out)
        return jnp.dot(im_ref[0:n_out, 0:k_taps * cin], w_ref[...],
                       preferred_element_type=jnp.float32)

    def bn_relu_mask(y, s_ref, b_ref, center_off):
        """Folded BN affine + relu, then zero rows whose sequence position is
        outside [0, seq_len): this IS the next layer's zero padding."""
        y = jnp.maximum(y * s_ref[...] + b_ref[...], 0.0)
        pos = base + center_off + lax.broadcasted_iota(
            jnp.int32, (y.shape[0], 1), 0)
        valid = jnp.logical_and(pos >= 0, pos < seq_len)
        return jnp.where(valid, y, 0.0).astype(jnp.bfloat16)

    # conv1 (k=7) + BN + relu + edge mask
    y1 = conv_im2col(lambda k, n: slab_ref[k:k + n, :], n_slab, k1, cip, w1_ref)
    y1 = bn_relu_mask(y1, s1_ref, b1_ref, k1 // 2)

    # conv2 (k=5) + BN + relu + edge mask
    n1 = n_slab - (k1 - 1)
    y2 = conv_im2col(lambda k, n: y1[k:k + n, :], n1, k2, cop, w2_ref)
    y2 = bn_relu_mask(y2, s2_ref, b2_ref, k1 // 2 + k2 // 2)

    # conv3 (k=3) + BN (no activation; out-of-range rows are sliced away later)
    n2 = n1 - (k2 - 1)
    y3 = conv_im2col(lambda k, n: y2[k:k + n, :], n2, k3, cop, w3_ref)
    y3 = y3 * s3_ref[...] + b3_ref[...]

    # rows of y3 corresponding to output rows [0, tl) of this tile
    off = hp - (k1 // 2 + k2 // 2 + k3 // 2)
    y3c = y3[off:off + tl, :]

    xc = xc_ref[0]
    if conv_shortcut:                    # folded 1x1 conv + BN shortcut
        sc = jnp.dot(xc, wsc_ref[...], preferred_element_type=jnp.float32)
        sc = sc * ssc_ref[...] + bsc_ref[...]
    else:                                # ni == nf: plain residual, no matmul
        sc = xc.astype(jnp.float32)

    o_ref[0] = jnp.maximum(y3c + sc, 0.0).astype(o_ref.dtype)


# ----------------------------------------------------------------------------
# Wrapper
# ----------------------------------------------------------------------------
def _fold_layer(layer, ci_pad, co_pad, eps=EPS):
    """PyTorch conv weight (Co,Ci,K) + conv bias + eval BatchNorm ->
    tap-stacked bf16 (K*Ci_pad, Co_pad) weight and f32 (1, Co_pad) scale/shift."""
    w = jnp.transpose(layer["w"], (2, 1, 0)).astype(jnp.float32)  # (K, Ci, Co)
    k, ci, co = w.shape
    scale = layer["gamma"] / jnp.sqrt(layer["var"] + eps)
    shift = layer["beta"] + scale * (layer["b"] - layer["mean"])
    wp = jnp.zeros((k, ci_pad, co_pad), jnp.float32).at[:, :ci, :co].set(w)
    wp = wp.reshape(k * ci_pad, co_pad).astype(jnp.bfloat16)      # tap-stacked
    sp = jnp.zeros((1, co_pad), jnp.float32).at[0, :co].set(scale)
    bp = jnp.zeros((1, co_pad), jnp.float32).at[0, :co].set(shift)
    return wp, sp, bp


def resblock_forward_nlc(x_nlc, params, *, tile_l=None, out_dtype=jnp.float32):
    """Channels-last entry point (no layout transposes).
    x_nlc: (N, L, ni).  Returns (N, L, nf) in out_dtype."""
    N, L, ni = x_nlc.shape
    nf = params["c1"]["w"].shape[0]
    ks = (params["c1"]["w"].shape[2], params["c2"]["w"].shape[2],
          params["c3"]["w"].shape[2])
    assert sum(k // 2 for k in ks) <= HALO, "halo too small for kernel sizes"
    cip = _round_up(ni, LANES)
    cop = _round_up(nf, LANES)

    # L tiling: a few-MiB working set per tile (slab + im2col + f32 temporaries)
    # amortizes the ~0.35us per-grid-step overhead and still fits the 32 MiB
    # scoped-VMEM default on every generation (v7x physical VMEM = 64 MiB).
    if tile_l is None:
        tile_l = max(64, min(1024, _round_up(262144 // max(cip, cop), HALO)))
    n_tiles = -(-L // tile_l)                          # cdiv
    tl = _round_up(-(-L // n_tiles), HALO)
    l_pad = n_tiles * tl
    blk_per_tile = tl // HALO                          # halo-blocks per tile
    n_hblk = l_pad // HALO

    w1, s1, b1 = _fold_layer(params["c1"], cip, cop)
    w2, s2, b2 = _fold_layer(params["c2"], cop, cop)
    w3, s3, b3 = _fold_layer(params["c3"], cop, cop)
    conv_shortcut = ni != nf
    wmax = max(ks[0] * cip, ks[1] * cop, ks[2] * cop)  # im2col scratch width

    # Zero-pad L to a tile multiple and channels to full 128-lane vregs; bf16
    # halves HBM/VMEM traffic into the MXU (accumulation stays f32).
    xp = jnp.zeros((N, l_pad, cip), jnp.bfloat16)
    xp = xp.at[:, :L, :ni].set(x_nlc.astype(jnp.bfloat16))

    def full_spec(arr):
        nd = arr.ndim
        return pl.BlockSpec(arr.shape, lambda n, t: (0,) * nd)

    in_specs = [
        # 8-row left halo, clamped at the sequence start (masked in-kernel)
        pl.BlockSpec((1, HALO, cip),
                     lambda n, t: (n, jnp.maximum(t * blk_per_tile - 1, 0), 0)),
        # center tile
        pl.BlockSpec((1, tl, cip), lambda n, t: (n, t, 0)),
        # 8-row right halo, clamped at the sequence end (masked in-kernel)
        pl.BlockSpec((1, HALO, cip),
                     lambda n, t: (n, jnp.minimum((t + 1) * blk_per_tile,
                                                  n_hblk - 1), 0)),
        full_spec(w1), full_spec(s1), full_spec(b1),
        full_spec(w2), full_spec(s2), full_spec(b2),
        full_spec(w3), full_spec(s3), full_spec(b3),
    ]
    args = [xp, xp, xp, w1, s1, b1, w2, s2, b2, w3, s3, b3]
    if conv_shortcut:
        wsc, ssc, bsc = _fold_layer(params["sc"], cip, cop)
        in_specs += [full_spec(wsc), full_spec(ssc), full_spec(bsc)]
        args += [wsc, ssc, bsc]

    contraction = (ks[0] * cip + ks[1] * cop + ks[2] * cop
                   + (cip if conv_shortcut else 0))
    flops = 2 * N * l_pad * cop * contraction
    bytes_accessed = (int(xp.size) * 2
                      + N * l_pad * cop * jnp.dtype(out_dtype).itemsize
                      + 2 * cop * contraction)

    out = pl.pallas_call(
        functools.partial(_resblock_kernel, conv_shortcut=conv_shortcut,
                          seq_len=L, ks=ks),
        out_shape=jax.ShapeDtypeStruct((N, l_pad, cop), out_dtype),
        grid=(N, n_tiles),
        in_specs=in_specs,
        out_specs=pl.BlockSpec((1, tl, cop), lambda n, t: (n, t, 0)),
        scratch_shapes=[pltpu.VMEM((tl + 2 * HALO, cip), jnp.bfloat16),
                        pltpu.VMEM((tl + 2 * HALO, wmax), jnp.bfloat16)],
        compiler_params=pltpu.CompilerParams(
            dimension_semantics=("parallel", "parallel")),
        cost_estimate=pl.CostEstimate(flops=int(flops), transcendentals=0,
                                      bytes_accessed=int(bytes_accessed)),
    )(*args)

    return out[:, :L, :nf]


def resblock_forward(x_ncl, params, *, tile_l=None, out_dtype=jnp.float32):
    """PyTorch-layout wrapper: x_ncl (N, ni, L) -> (N, nf, L).
    Prefer resblock_forward_nlc for stacked blocks (avoids the transposes and
    can keep padded bf16 activations between blocks)."""
    x_nlc = jnp.transpose(x_ncl, (0, 2, 1))
    out_nlc = resblock_forward_nlc(x_nlc, params, tile_l=tile_l,
                                   out_dtype=out_dtype)
    return jnp.transpose(out_nlc, (0, 2, 1))


# ----------------------------------------------------------------------------
# Deterministic parameter init + pure-JAX reference for validation
# ----------------------------------------------------------------------------
def make_params(key, ni, nf, ks=(7, 5, 3)):
    defs = [("c1", ni, nf, ks[0]), ("c2", nf, nf, ks[1]),
            ("c3", nf, nf, ks[2]), ("sc", ni, nf, 1)]
    keys = iter(jax.random.split(key, 6 * len(defs)))
    params = {}
    for name, ci, co, k in defs:
        params[name] = dict(
            w=0.1 * jax.random.normal(next(keys), (co, ci, k), jnp.float32),
            b=0.1 * jax.random.normal(next(keys), (co,), jnp.float32),
            gamma=1.0 + 0.1 * jax.random.normal(next(keys), (co,), jnp.float32),
            beta=0.1 * jax.random.normal(next(keys), (co,), jnp.float32),
            mean=0.1 * jax.random.normal(next(keys), (co,), jnp.float32),
            var=0.5 + jax.random.uniform(next(keys), (co,), jnp.float32),
        )
    return params


def resblock_reference(x_ncl, params, eps=EPS):
    def conv_bn(x, layer, act):
        w = layer["w"]                     # (Co, Ci, K)
        K = w.shape[-1]
        y = lax.conv_general_dilated(
            x, w, window_strides=(1,), padding=[(K // 2, K // 2)],
            dimension_numbers=("NCH", "OIH", "NCH"),
            precision=lax.Precision.HIGHEST)
        y = y + layer["b"][None, :, None]
        y = (y - layer["mean"][None, :, None]) / jnp.sqrt(
            layer["var"][None, :, None] + eps)
        y = y * layer["gamma"][None, :, None] + layer["beta"][None, :, None]
        return jnp.maximum(y, 0.0) if act else y

    ni = x_ncl.shape[1]
    nf = params["c1"]["w"].shape[0]
    y = conv_bn(x_ncl, params["c1"], True)
    y = conv_bn(y, params["c2"], True)
    y = conv_bn(y, params["c3"], False)
    sc = x_ncl if ni == nf else conv_bn(x_ncl, params["sc"], False)
    return jnp.maximum(y + sc, 0.0)


if __name__ == "__main__":
    key = jax.random.PRNGKey(0)
    cases = [
        # (N, ni, nf, L, tile_l)
        (2, 4, 8, 40, 16),    # 1x1-conv shortcut, 3 L-tiles (halo + edge masks)
        (2, 8, 8, 16, None),  # identity shortcut, single tile
        (2, 8, 8, 40, 16),    # identity shortcut, multi-tile + L padding
    ]
    for idx, (N, ni, nf, L, tile_l) in enumerate(cases):
        kx, kp, key = jax.random.split(key, 3)
        x = jax.random.normal(kx, (N, ni, L), jnp.float32)
        params = make_params(kp, ni, nf)

        out = jax.block_until_ready(resblock_forward(x, params, tile_l=tile_l))
        ref = jax.block_until_ready(resblock_reference(x, params))

        assert out.shape == (N, nf, L), out.shape
        # bf16 MXU inputs / activations with f32 accumulation: ~1e-2 expected.
        max_err = float(jnp.max(jnp.abs(out - ref)))
        assert jnp.allclose(out, ref, rtol=5e-2, atol=5e-2), (idx, max_err)

    print("KERNEL_OK")
</pallas_src>

<mosaic_0001>
module attributes {stable_mosaic.version = 11 : i64} {
  func.func @_resblock_kernel(%arg0: i32, %arg1: i32, %arg2: memref<1x8x128xbf16, #tpu.memory_space<vmem>>, %arg3: memref<1x16x128xbf16, #tpu.memory_space<vmem>>, %arg4: memref<1x8x128xbf16, #tpu.memory_space<vmem>>, %arg5: memref<896x128xbf16, #tpu.memory_space<vmem>>, %arg6: memref<1x128xf32, #tpu.memory_space<vmem>>, %arg7: memref<1x128xf32, #tpu.memory_space<vmem>>, %arg8: memref<640x128xbf16, #tpu.memory_space<vmem>>, %arg9: memref<1x128xf32, #tpu.memory_space<vmem>>, %arg10: memref<1x128xf32, #tpu.memory_space<vmem>>, %arg11: memref<384x128xbf16, #tpu.memory_space<vmem>>, %arg12: memref<1x128xf32, #tpu.memory_space<vmem>>, %arg13: memref<1x128xf32, #tpu.memory_space<vmem>>, %arg14: memref<128x128xbf16, #tpu.memory_space<vmem>>, %arg15: memref<1x128xf32, #tpu.memory_space<vmem>>, %arg16: memref<1x128xf32, #tpu.memory_space<vmem>>, %arg17: memref<1x16x128xf32, #tpu.memory_space<vmem>>, %arg18: memref<32x128xbf16, #tpu.memory_space<vmem>>, %arg19: memref<32x896xbf16, #tpu.memory_space<vmem>>) attributes {dimension_semantics = [#tpu.dimension_semantics<parallel>, #tpu.dimension_semantics<parallel>], iteration_bounds = array<i64: 2, 3>, scalar_prefetch = 0 : i64, scratch_operands = 2 : i64, tpu.core_type = #tpu.core_type<tc>, window_params = [{transform_indices = @transform_0, window_bounds = array<i64: 1, 8, 128>}, {transform_indices = @transform_1, window_bounds = array<i64: 1, 16, 128>}, {transform_indices = @transform_2, window_bounds = array<i64: 1, 8, 128>}, {pipeline_mode = #tpu.pipeline_mode<synchronous>, transform_indices = @transform_3, window_bounds = array<i64: 896, 128>}, {pipeline_mode = #tpu.pipeline_mode<synchronous>, transform_indices = @transform_4, window_bounds = array<i64: 1, 128>}, {pipeline_mode = #tpu.pipeline_mode<synchronous>, transform_indices = @transform_5, window_bounds = array<i64: 1, 128>}, {pipeline_mode = #tpu.pipeline_mode<synchronous>, transform_indices = @transform_6, window_bounds = array<i64: 640, 128>}, {pipeline_mode = #tpu.pipeline_mode<synchronous>, transform_indices = @transform_7, window_bounds = array<i64: 1, 128>}, {pipeline_mode = #tpu.pipeline_mode<synchronous>, transform_indices = @transform_8, window_bounds = array<i64: 1, 128>}, {pipeline_mode = #tpu.pipeline_mode<synchronous>, transform_indices = @transform_9, window_bounds = array<i64: 384, 128>}, {pipeline_mode = #tpu.pipeline_mode<synchronous>, transform_indices = @transform_10, window_bounds = array<i64: 1, 128>}, {pipeline_mode = #tpu.pipeline_mode<synchronous>, transform_indices = @transform_11, window_bounds = array<i64: 1, 128>}, {pipeline_mode = #tpu.pipeline_mode<synchronous>, transform_indices = @transform_12, window_bounds = array<i64: 128, 128>}, {pipeline_mode = #tpu.pipeline_mode<synchronous>, transform_indices = @transform_13, window_bounds = array<i64: 1, 128>}, {pipeline_mode = #tpu.pipeline_mode<synchronous>, transform_indices = @transform_14, window_bounds = array<i64: 1, 128>}, {transform_indices = @transform_15, window_bounds = array<i64: 1, 16, 128>}]} {
    %c16_i32 = arith.constant 16 : i32
    %0 = arith.muli %arg1, %c16_i32 : i32
    %c8_i32 = arith.constant 8 : i32
    %1 = arith.subi %0, %c8_i32 : i32
    %c0_i32 = arith.constant 0 : i32
    %2 = arith.cmpi sgt, %arg1, %c0_i32 : i32
    %c0 = arith.constant 0 : index
    %c0_0 = arith.constant 0 : index
    %c0_1 = arith.constant 0 : index
    %3 = vector.load %arg2[%c0, %c0_0, %c0_1] : memref<1x8x128xbf16, #tpu.memory_space<vmem>>, vector<1x8x128xbf16>
    %4 = vector.shape_cast %3 : vector<1x8x128xbf16> to vector<8x128xbf16>
    %cst = arith.constant 0.000000e+00 : bf16
    %5 = vector.broadcast %cst : bf16 to vector<8x128xbf16>
    %6 = arith.select %2, %4, %5 : vector<8x128xbf16>
    %c0_2 = arith.constant 0 : index
    %c0_3 = arith.constant 0 : index
    %7 = vector.load %arg18[%c0_2, %c0_3] : memref<32x128xbf16, #tpu.memory_space<vmem>>, vector<8x128xbf16>
    tpu.vector_store %arg18[%c0_2, %c0_3], %6 {strides = array<i32>} : memref<32x128xbf16, #tpu.memory_space<vmem>>, vector<8x128xbf16>,
    %c0_4 = arith.constant 0 : index
    %c0_5 = arith.constant 0 : index
    %c0_6 = arith.constant 0 : index
    %8 = vector.load %arg3[%c0_4, %c0_5, %c0_6] : memref<1x16x128xbf16, #tpu.memory_space<vmem>>, vector<1x16x128xbf16>
    %9 = vector.shape_cast %8 : vector<1x16x128xbf16> to vector<16x128xbf16>
    %c8 = arith.constant 8 : index
    %c0_7 = arith.constant 0 : index
    %10 = vector.load %arg18[%c8, %c0_7] : memref<32x128xbf16, #tpu.memory_space<vmem>>, vector<16x128xbf16>
    tpu.vector_store %arg18[%c8, %c0_7], %9 {strides = array<i32>} : memref<32x128xbf16, #tpu.memory_space<vmem>>, vector<16x128xbf16>,
    %c2_i32 = arith.constant 2 : i32
    %11 = arith.cmpi slt, %arg1, %c2_i32 : i32
    %c0_8 = arith.constant 0 : index
    %c0_9 = arith.constant 0 : index
    %c0_10 = arith.constant 0 : index
    %12 = vector.load %arg4[%c0_8, %c0_9, %c0_10] : memref<1x8x128xbf16, #tpu.memory_space<vmem>>, vector<1x8x128xbf16>
    %13 = vector.shape_cast %12 : vector<1x8x128xbf16> to vector<8x128xbf16>
    %cst_11 = arith.constant 0.000000e+00 : bf16
    %14 = vector.broadcast %cst_11 : bf16 to vector<8x128xbf16>
    %15 = arith.select %11, %13, %14 : vector<8x128xbf16>
    %c24 = arith.constant 24 : index
    %c0_12 = arith.constant 0 : index
    %16 = vector.load %arg18[%c24, %c0_12] : memref<32x128xbf16, #tpu.memory_space<vmem>>, vector<8x128xbf16>
    tpu.vector_store %arg18[%c24, %c0_12], %15 {strides = array<i32>} : memref<32x128xbf16, #tpu.memory_space<vmem>>, vector<8x128xbf16>,
    %c0_13 = arith.constant 0 : index
    %c0_14 = arith.constant 0 : index
    %17 = vector.load %arg18[%c0_13, %c0_14] : memref<32x128xbf16, #tpu.memory_space<vmem>>, vector<26x128xbf16>
    %c0_15 = arith.constant 0 : index
    %c0_16 = arith.constant 0 : index
    %18 = vector.load %arg19[%c0_15, %c0_16] : memref<32x896xbf16, #tpu.memory_space<vmem>>, vector<26x128xbf16>
    tpu.vector_store %arg19[%c0_15, %c0_16], %17 {strides = array<i32>} : memref<32x896xbf16, #tpu.memory_space<vmem>>, vector<26x128xbf16>,
    %c1 = arith.constant 1 : index
    %c0_17 = arith.constant 0 : index
    %19 = vector.load %arg18[%c1, %c0_17] : memref<32x128xbf16, #tpu.memory_space<vmem>>, vector<26x128xbf16>
    %c0_18 = arith.constant 0 : index
    %c128 = arith.constant 128 : index
    %20 = vector.load %arg19[%c0_18, %c128] : memref<32x896xbf16, #tpu.memory_space<vmem>>, vector<26x128xbf16>
    tpu.vector_store %arg19[%c0_18, %c128], %19 {strides = array<i32>} : memref<32x896xbf16, #tpu.memory_space<vmem>>, vector<26x128xbf16>,
    %c2 = arith.constant 2 : index
    %c0_19 = arith.constant 0 : index
    %21 = vector.load %arg18[%c2, %c0_19] : memref<32x128xbf16, #tpu.memory_space<vmem>>, vector<26x128xbf16>
    %c0_20 = arith.constant 0 : index
    %c256 = arith.constant 256 : index
    %22 = vector.load %arg19[%c0_20, %c256] : memref<32x896xbf16, #tpu.memory_space<vmem>>, vector<26x128xbf16>
    tpu.vector_store %arg19[%c0_20, %c256], %21 {strides = array<i32>} : memref<32x896xbf16, #tpu.memory_space<vmem>>, vector<26x128xbf16>,
    %c3 = arith.constant 3 : index
    %c0_21 = arith.constant 0 : index
    %23 = vector.load %arg18[%c3, %c0_21] : memref<32x128xbf16, #tpu.memory_space<vmem>>, vector<26x128xbf16>
    %c0_22 = arith.constant 0 : index
    %c384 = arith.constant 384 : index
    %24 = vector.load %arg19[%c0_22, %c384] : memref<32x896xbf16, #tpu.memory_space<vmem>>, vector<26x128xbf16>
    tpu.vector_store %arg19[%c0_22, %c384], %23 {strides = array<i32>} : memref<32x896xbf16, #tpu.memory_space<vmem>>, vector<26x128xbf16>,
    %c4 = arith.constant 4 : index
    %c0_23 = arith.constant 0 : index
    %25 = vector.load %arg18[%c4, %c0_23] : memref<32x128xbf16, #tpu.memory_space<vmem>>, vector<26x128xbf16>
    %c0_24 = arith.constant 0 : index
    %c512 = arith.constant 512 : index
    %26 = vector.load %arg19[%c0_24, %c512] : memref<32x896xbf16, #tpu.memory_space<vmem>>, vector<26x128xbf16>
    tpu.vector_store %arg19[%c0_24, %c512], %25 {strides = array<i32>} : memref<32x896xbf16, #tpu.memory_space<vmem>>, vector<26x128xbf16>,
    %c5 = arith.constant 5 : index
    %c0_25 = arith.constant 0 : index
    %27 = vector.load %arg18[%c5, %c0_25] : memref<32x128xbf16, #tpu.memory_space<vmem>>, vector<26x128xbf16>
    %c0_26 = arith.constant 0 : index
    %c640 = arith.constant 640 : index
    %28 = vector.load %arg19[%c0_26, %c640] : memref<32x896xbf16, #tpu.memory_space<vmem>>, vector<26x128xbf16>
    tpu.vector_store %arg19[%c0_26, %c640], %27 {strides = array<i32>} : memref<32x896xbf16, #tpu.memory_space<vmem>>, vector<26x128xbf16>,
    %c6 = arith.constant 6 : index
    %c0_27 = arith.constant 0 : index
    %29 = vector.load %arg18[%c6, %c0_27] : memref<32x128xbf16, #tpu.memory_space<vmem>>, vector<26x128xbf16>
    %c0_28 = arith.constant 0 : index
    %c768 = arith.constant 768 : index
    %30 = vector.load %arg19[%c0_28, %c768] : memref<32x896xbf16, #tpu.memory_space<vmem>>, vector<26x128xbf16>
    tpu.vector_store %arg19[%c0_28, %c768], %29 {strides = array<i32>} : memref<32x896xbf16, #tpu.memory_space<vmem>>, vector<26x128xbf16>,
    %c0_29 = arith.constant 0 : index
    %c0_30 = arith.constant 0 : index
    %31 = vector.load %arg19[%c0_29, %c0_30] : memref<32x896xbf16, #tpu.memory_space<vmem>>, vector<26x896xbf16>
    %c0_31 = arith.constant 0 : index
    %c0_32 = arith.constant 0 : index
    %32 = vector.load %arg5[%c0_31, %c0_32] : memref<896x128xbf16, #tpu.memory_space<vmem>>, vector<896x128xbf16>
    %cst_33 = arith.constant dense<0.000000e+00> : vector<26x128xf32>
    %33 = tpu.matmul %31, %32, %cst_33 {dimension_numbers = #tpu.dot_dimension_numbers<[1], [0], [0], [1], [0, 0, 1, 1], [], []>} : vector<26x896xbf16>, vector<896x128xbf16>, vector<26x128xf32> -> vector<26x128xf32>
    %c0_34 = arith.constant 0 : index
    %c0_35 = arith.constant 0 : index
    %34 = vector.load %arg6[%c0_34, %c0_35] : memref<1x128xf32, #tpu.memory_space<vmem>>, vector<1x128xf32>
    %35 = vector.broadcast %34 : vector<1x128xf32> to vector<26x128xf32>
    %36 = arith.mulf %33, %35 : vector<26x128xf32>
    %c0_36 = arith.constant 0 : index
    %c0_37 = arith.constant 0 : index
    %37 = vector.load %arg7[%c0_36, %c0_37] : memref<1x128xf32, #tpu.memory_space<vmem>>, vector<1x128xf32>
    %38 = vector.broadcast %37 : vector<1x128xf32> to vector<26x128xf32>
    %39 = arith.addf %36, %38 : vector<26x128xf32>
    %cst_38 = arith.constant 0.000000e+00 : f32
    %40 = vector.broadcast %cst_38 : f32 to vector<26x128xf32>
    %41 = arith.maximumf %39, %40 : vector<26x128xf32>
    %c3_i32 = arith.constant 3 : i32
    %42 = arith.addi %1, %c3_i32 : i32
    %43 = tpu.iota {dimensions = array<i32: 0>} : vector<26x1xi32>
    %44 = vector.broadcast %42 : i32 to vector<26x1xi32>
    %45 = arith.addi %44, %43 : vector<26x1xi32>
    %c0_i32_39 = arith.constant 0 : i32
    %46 = vector.broadcast %c0_i32_39 : i32 to vector<26x1xi32>
    %47 = arith.cmpi sge, %45, %46 : vector<26x1xi32>
    %c40_i32 = arith.constant 40 : i32
    %48 = vector.broadcast %c40_i32 : i32 to vector<26x1xi32>
    %49 = arith.cmpi slt, %45, %48 : vector<26x1xi32>
    %50 = arith.andi %47, %49 : vector<26x1xi1>
    %cst_40 = arith.constant 0.000000e+00 : f32
    %51 = vector.shape_cast %50 : vector<26x1xi1> to vector<26x1xi1>
    %52 = vector.broadcast %51 : vector<26x1xi1> to vector<26x128xi1>
    %53 = vector.broadcast %cst_40 : f32 to vector<26x128xf32>
    %54 = arith.select %52, %41, %53 : vector<26x128xi1>, vector<26x128xf32>
    %55 = arith.truncf %54 : vector<26x128xf32> to vector<26x128xbf16>
    %56 = vector.extract_strided_slice %55 {offsets = [0, 0], sizes = [22, 128], strides = [1, 1]} : vector<26x128xbf16> to vector<22x128xbf16>
    %c0_41 = arith.constant 0 : index
    %c0_42 = arith.constant 0 : index
    %57 = vector.load %arg19[%c0_41, %c0_42] : memref<32x896xbf16, #tpu.memory_space<vmem>>, vector<22x128xbf16>
    tpu.vector_store %arg19[%c0_41, %c0_42], %56 {strides = array<i32>} : memref<32x896xbf16, #tpu.memory_space<vmem>>, vector<22x128xbf16>,
    %58 = vector.extract_strided_slice %55 {offsets = [1, 0], sizes = [22, 128], strides = [1, 1]} : vector<26x128xbf16> to vector<22x128xbf16>
    %c0_43 = arith.constant 0 : index
    %c128_44 = arith.constant 128 : index
    %59 = vector.load %arg19[%c0_43, %c128_44] : memref<32x896xbf16, #tpu.memory_space<vmem>>, vector<22x128xbf16>
    tpu.vector_store %arg19[%c0_43, %c128_44], %58 {strides = array<i32>} : memref<32x896xbf16, #tpu.memory_space<vmem>>, vector<22x128xbf16>,
    %60 = vector.extract_strided_slice %55 {offsets = [2, 0], sizes = [22, 128], strides = [1, 1]} : vector<26x128xbf16> to vector<22x128xbf16>
    %c0_45 = arith.constant 0 : index
    %c256_46 = arith.constant 256 : index
    %61 = vector.load %arg19[%c0_45, %c256_46] : memref<32x896xbf16, #tpu.memory_space<vmem>>, vector<22x128xbf16>
    tpu.vector_store %arg19[%c0_45, %c256_46], %60 {strides = array<i32>} : memref<32x896xbf16, #tpu.memory_space<vmem>>, vector<22x128xbf16>,
    %62 = vector.extract_strided_slice %55 {offsets = [3, 0], sizes = [22, 128], strides = [1, 1]} : vector<26x128xbf16> to vector<22x128xbf16>
    %c0_47 = arith.constant 0 : index
    %c384_48 = arith.constant 384 : index
    %63 = vector.load %arg19[%c0_47, %c384_48] : memref<32x896xbf16, #tpu.memory_space<vmem>>, vector<22x128xbf16>
    tpu.vector_store %arg19[%c0_47, %c384_48], %62 {strides = array<i32>} : memref<32x896xbf16, #tpu.memory_space<vmem>>, vector<22x128xbf16>,
    %64 = vector.extract_strided_slice %55 {offsets = [4, 0], sizes = [22, 128], strides = [1, 1]} : vector<26x128xbf16> to vector<22x128xbf16>
    %c0_49 = arith.constant 0 : index
    %c512_50 = arith.constant 512 : index
    %65 = vector.load %arg19[%c0_49, %c512_50] : memref<32x896xbf16, #tpu.memory_space<vmem>>, vector<22x128xbf16>
    tpu.vector_store %arg19[%c0_49, %c512_50], %64 {strides = array<i32>} : memref<32x896xbf16, #tpu.memory_space<vmem>>, vector<22x128xbf16>,
    %c0_51 = arith.constant 0 : index
    %c0_52 = arith.constant 0 : index
    %66 = vector.load %arg19[%c0_51, %c0_52] : memref<32x896xbf16, #tpu.memory_space<vmem>>, vector<22x640xbf16>
    %c0_53 = arith.constant 0 : index
    %c0_54 = arith.constant 0 : index
    %67 = vector.load %arg8[%c0_53, %c0_54] : memref<640x128xbf16, #tpu.memory_space<vmem>>, vector<640x128xbf16>
    %cst_55 = arith.constant dense<0.000000e+00> : vector<22x128xf32>
    %68 = tpu.matmul %66, %67, %cst_55 {dimension_numbers = #tpu.dot_dimension_numbers<[1], [0], [0], [1], [0, 0, 1, 1], [], []>} : vector<22x640xbf16>, vector<640x128xbf16>, vector<22x128xf32> -> vector<22x128xf32>
    %c0_56 = arith.constant 0 : index
    %c0_57 = arith.constant 0 : index
    %69 = vector.load %arg9[%c0_56, %c0_57] : memref<1x128xf32, #tpu.memory_space<vmem>>, vector<1x128xf32>
    %70 = vector.broadcast %69 : vector<1x128xf32> to vector<22x128xf32>
    %71 = arith.mulf %68, %70 : vector<22x128xf32>
    %c0_58 = arith.constant 0 : index
    %c0_59 = arith.constant 0 : index
    %72 = vector.load %arg10[%c0_58, %c0_59] : memref<1x128xf32, #tpu.memory_space<vmem>>, vector<1x128xf32>
    %73 = vector.broadcast %72 : vector<1x128xf32> to vector<22x128xf32>
    %74 = arith.addf %71, %73 : vector<22x128xf32>
    %cst_60 = arith.constant 0.000000e+00 : f32
    %75 = vector.broadcast %cst_60 : f32 to vector<22x128xf32>
    %76 = arith.maximumf %74, %75 : vector<22x128xf32>
    %c5_i32 = arith.constant 5 : i32
    %77 = arith.addi %1, %c5_i32 : i32
    %78 = tpu.iota {dimensions = array<i32: 0>} : vector<22x1xi32>
    %79 = vector.broadcast %77 : i32 to vector<22x1xi32>
    %80 = arith.addi %79, %78 : vector<22x1xi32>
    %c0_i32_61 = arith.constant 0 : i32
    %81 = vector.broadcast %c0_i32_61 : i32 to vector<22x1xi32>
    %82 = arith.cmpi sge, %80, %81 : vector<22x1xi32>
    %c40_i32_62 = arith.constant 40 : i32
    %83 = vector.broadcast %c40_i32_62 : i32 to vector<22x1xi32>
    %84 = arith.cmpi slt, %80, %83 : vector<22x1xi32>
    %85 = arith.andi %82, %84 : vector<22x1xi1>
    %cst_63 = arith.constant 0.000000e+00 : f32
    %86 = vector.shape_cast %85 : vector<22x1xi1> to vector<22x1xi1>
    %87 = vector.broadcast %86 : vector<22x1xi1> to vector<22x128xi1>
    %88 = vector.broadcast %cst_63 : f32 to vector<22x128xf32>
    %89 = arith.select %87, %76, %88 : vector<22x128xi1>, vector<22x128xf32>
    %90 = arith.truncf %89 : vector<22x128xf32> to vector<22x128xbf16>
    %91 = vector.extract_strided_slice %90 {offsets = [0, 0], sizes = [20, 128], strides = [1, 1]} : vector<22x128xbf16> to vector<20x128xbf16>
    %c0_64 = arith.constant 0 : index
    %c0_65 = arith.constant 0 : index
    %92 = vector.load %arg19[%c0_64, %c0_65] : memref<32x896xbf16, #tpu.memory_space<vmem>>, vector<20x128xbf16>
    tpu.vector_store %arg19[%c0_64, %c0_65], %91 {strides = array<i32>} : memref<32x896xbf16, #tpu.memory_space<vmem>>, vector<20x128xbf16>,
    %93 = vector.extract_strided_slice %90 {offsets = [1, 0], sizes = [20, 128], strides = [1, 1]} : vector<22x128xbf16> to vector<20x128xbf16>
    %c0_66 = arith.constant 0 : index
    %c128_67 = arith.constant 128 : index
    %94 = vector.load %arg19[%c0_66, %c128_67] : memref<32x896xbf16, #tpu.memory_space<vmem>>, vector<20x128xbf16>
    tpu.vector_store %arg19[%c0_66, %c128_67], %93 {strides = array<i32>} : memref<32x896xbf16, #tpu.memory_space<vmem>>, vector<20x128xbf16>,
    %95 = vector.extract_strided_slice %90 {offsets = [2, 0], sizes = [20, 128], strides = [1, 1]} : vector<22x128xbf16> to vector<20x128xbf16>
    %c0_68 = arith.constant 0 : index
    %c256_69 = arith.constant 256 : index
    %96 = vector.load %arg19[%c0_68, %c256_69] : memref<32x896xbf16, #tpu.memory_space<vmem>>, vector<20x128xbf16>
    tpu.vector_store %arg19[%c0_68, %c256_69], %95 {strides = array<i32>} : memref<32x896xbf16, #tpu.memory_space<vmem>>, vector<20x128xbf16>,
    %c0_70 = arith.constant 0 : index
    %c0_71 = arith.constant 0 : index
    %97 = vector.load %arg19[%c0_70, %c0_71] : memref<32x896xbf16, #tpu.memory_space<vmem>>, vector<20x384xbf16>
    %c0_72 = arith.constant 0 : index
    %c0_73 = arith.constant 0 : index
    %98 = vector.load %arg11[%c0_72, %c0_73] : memref<384x128xbf16, #tpu.memory_space<vmem>>, vector<384x128xbf16>
    %cst_74 = arith.constant dense<0.000000e+00> : vector<20x128xf32>
    %99 = tpu.matmul %97, %98, %cst_74 {dimension_numbers = #tpu.dot_dimension_numbers<[1], [0], [0], [1], [0, 0, 1, 1], [], []>} : vector<20x384xbf16>, vector<384x128xbf16>, vector<20x128xf32> -> vector<20x128xf32>
    %c0_75 = arith.constant 0 : index
    %c0_76 = arith.constant 0 : index
    %100 = vector.load %arg12[%c0_75, %c0_76] : memref<1x128xf32, #tpu.memory_space<vmem>>, vector<1x128xf32>
    %101 = vector.broadcast %100 : vector<1x128xf32> to vector<20x128xf32>
    %102 = arith.mulf %99, %101 : vector<20x128xf32>
    %c0_77 = arith.constant 0 : index
    %c0_78 = arith.constant 0 : index
    %103 = vector.load %arg13[%c0_77, %c0_78] : memref<1x128xf32, #tpu.memory_space<vmem>>, vector<1x128xf32>
    %104 = vector.broadcast %103 : vector<1x128xf32> to vector<20x128xf32>
    %105 = arith.addf %102, %104 : vector<20x128xf32>
    %106 = vector.extract_strided_slice %105 {offsets = [2, 0], sizes = [16, 128], strides = [1, 1]} : vector<20x128xf32> to vector<16x128xf32>
    %c0_79 = arith.constant 0 : index
    %c0_80 = arith.constant 0 : index
    %c0_81 = arith.constant 0 : index
    %107 = vector.load %arg3[%c0_79, %c0_80, %c0_81] : memref<1x16x128xbf16, #tpu.memory_space<vmem>>, vector<1x16x128xbf16>
    %108 = vector.shape_cast %107 : vector<1x16x128xbf16> to vector<16x128xbf16>
    %c0_82 = arith.constant 0 : index
    %c0_83 = arith.constant 0 : index
    %109 = vector.load %arg14[%c0_82, %c0_83] : memref<128x128xbf16, #tpu.memory_space<vmem>>, vector<128x128xbf16>
    %cst_84 = arith.constant dense<0.000000e+00> : vector<16x128xf32>
    %110 = tpu.matmul %108, %109, %cst_84 {dimension_numbers = #tpu.dot_dimension_numbers<[1], [0], [0], [1], [0, 0, 1, 1], [], []>} : vector<16x128xbf16>, vector<128x128xbf16>, vector<16x128xf32> -> vector<16x128xf32>
    %c0_85 = arith.constant 0 : index
    %c0_86 = arith.constant 0 : index
    %111 = vector.load %arg15[%c0_85, %c0_86] : memref<1x128xf32, #tpu.memory_space<vmem>>, vector<1x128xf32>
    %112 = vector.broadcast %111 : vector<1x128xf32> to vector<16x128xf32>
    %113 = arith.mulf %110, %112 : vector<16x128xf32>
    %c0_87 = arith.constant 0 : index
    %c0_88 = arith.constant 0 : index
    %114 = vector.load %arg16[%c0_87, %c0_88] : memref<1x128xf32, #tpu.memory_space<vmem>>, vector<1x128xf32>
    %115 = vector.broadcast %114 : vector<1x128xf32> to vector<16x128xf32>
    %116 = arith.addf %113, %115 : vector<16x128xf32>
    %117 = arith.addf %106, %116 : vector<16x128xf32>
    %cst_89 = arith.constant 0.000000e+00 : f32
    %118 = vector.broadcast %cst_89 : f32 to vector<16x128xf32>
    %119 = arith.maximumf %117, %118 : vector<16x128xf32>
    %c0_90 = arith.constant 0 : index
    %c0_91 = arith.constant 0 : index
    %c0_92 = arith.constant 0 : index
    %120 = vector.load %arg17[%c0_90, %c0_91, %c0_92] : memref<1x16x128xf32, #tpu.memory_space<vmem>>, vector<1x16x128xf32>
    %121 = vector.shape_cast %120 : vector<1x16x128xf32> to vector<16x128xf32>
    %122 = vector.shape_cast %119 : vector<16x128xf32> to vector<1x16x128xf32>
    tpu.vector_store %arg17[%c0_90, %c0_91, %c0_92], %122 {strides = array<i32>} : memref<1x16x128xf32, #tpu.memory_space<vmem>>, vector<1x16x128xf32>,
    return
  }
  func.func @transform_0(%arg0: i32, %arg1: i32) -> (i32, i32, i32) {
    %c2_i32 = arith.constant 2 : i32
    %0 = arith.muli %arg1, %c2_i32 : i32
    %c1_i32 = arith.constant 1 : i32
    %1 = arith.subi %0, %c1_i32 : i32
    %c0_i32 = arith.constant 0 : i32
    %2 = arith.maxsi %1, %c0_i32 : i32
    %c0_i32_0 = arith.constant 0 : i32
    %c0_i32_1 = arith.constant 0 : i32
    return %arg0, %2, %c0_i32_0 : i32, i32, i32
  }
  func.func @transform_1(%arg0: i32, %arg1: i32) -> (i32, i32, i32) {
    %c0_i32 = arith.constant 0 : i32
    %c0_i32_0 = arith.constant 0 : i32
    return %arg0, %arg1, %c0_i32 : i32, i32, i32
  }
  func.func @transform_2(%arg0: i32, %arg1: i32) -> (i32, i32, i32) {
    %c1_i32 = arith.constant 1 : i32
    %0 = arith.addi %arg1, %c1_i32 : i32
    %c2_i32 = arith.constant 2 : i32
    %1 = arith.muli %0, %c2_i32 : i32
    %c5_i32 = arith.constant 5 : i32
    %2 = arith.minsi %1, %c5_i32 : i32
    %c0_i32 = arith.constant 0 : i32
    %c0_i32_0 = arith.constant 0 : i32
    return %arg0, %2, %c0_i32 : i32, i32, i32
  }
  func.func @transform_3(%arg0: i32, %arg1: i32) -> (i32, i32) {
    %c0_i32 = arith.constant 0 : i32
    %c0_i32_0 = arith.constant 0 : i32
    %c0_i32_1 = arith.constant 0 : i32
    return %c0_i32, %c0_i32_0 : i32, i32
  }
  func.func @transform_4(%arg0: i32, %arg1: i32) -> (i32, i32) {
    %c0_i32 = arith.constant 0 : i32
    %c0_i32_0 = arith.constant 0 : i32
    %c0_i32_1 = arith.constant 0 : i32
    return %c0_i32, %c0_i32_0 : i32, i32
  }
  func.func @transform_5(%arg0: i32, %arg1: i32) -> (i32, i32) {
    %c0_i32 = arith.constant 0 : i32
    %c0_i32_0 = arith.constant 0 : i32
    %c0_i32_1 = arith.constant 0 : i32
    return %c0_i32, %c0_i32_0 : i32, i32
  }
  func.func @transform_6(%arg0: i32, %arg1: i32) -> (i32, i32) {
    %c0_i32 = arith.constant 0 : i32
    %c0_i32_0 = arith.constant 0 : i32
    %c0_i32_1 = arith.constant 0 : i32
    return %c0_i32, %c0_i32_0 : i32, i32
  }
  func.func @transform_7(%arg0: i32, %arg1: i32) -> (i32, i32) {
    %c0_i32 = arith.constant 0 : i32
    %c0_i32_0 = arith.constant 0 : i32
    %c0_i32_1 = arith.constant 0 : i32
    return %c0_i32, %c0_i32_0 : i32, i32
  }
  func.func @transform_8(%arg0: i32, %arg1: i32) -> (i32, i32) {
    %c0_i32 = arith.constant 0 : i32
    %c0_i32_0 = arith.constant 0 : i32
    %c0_i32_1 = arith.constant 0 : i32
    return %c0_i32, %c0_i32_0 : i32, i32
  }
  func.func @transform_9(%arg0: i32, %arg1: i32) -> (i32, i32) {
    %c0_i32 = arith.constant 0 : i32
    %c0_i32_0 = arith.constant 0 : i32
    %c0_i32_1 = arith.constant 0 : i32
    return %c0_i32, %c0_i32_0 : i32, i32
  }
  func.func @transform_10(%arg0: i32, %arg1: i32) -> (i32, i32) {
    %c0_i32 = arith.constant 0 : i32
    %c0_i32_0 = arith.constant 0 : i32
    %c0_i32_1 = arith.constant 0 : i32
    return %c0_i32, %c0_i32_0 : i32, i32
  }
  func.func @transform_11(%arg0: i32, %arg1: i32) -> (i32, i32) {
    %c0_i32 = arith.constant 0 : i32
    %c0_i32_0 = arith.constant 0 : i32
    %c0_i32_1 = arith.constant 0 : i32
    return %c0_i32, %c0_i32_0 : i32, i32
  }
  func.func @transform_12(%arg0: i32, %arg1: i32) -> (i32, i32) {
    %c0_i32 = arith.constant 0 : i32
    %c0_i32_0 = arith.constant 0 : i32
    %c0_i32_1 = arith.constant 0 : i32
    return %c0_i32, %c0_i32_0 : i32, i32
  }
  func.func @transform_13(%arg0: i32, %arg1: i32) -> (i32, i32) {
    %c0_i32 = arith.constant 0 : i32
    %c0_i32_0 = arith.constant 0 : i32
    %c0_i32_1 = arith.constant 0 : i32
    return %c0_i32, %c0_i32_0 : i32, i32
  }
  func.func @transform_14(%arg0: i32, %arg1: i32) -> (i32, i32) {
    %c0_i32 = arith.constant 0 : i32
    %c0_i32_0 = arith.constant 0 : i32
    %c0_i32_1 = arith.constant 0 : i32
    return %c0_i32, %c0_i32_0 : i32, i32
  }
  func.func @transform_15(%arg0: i32, %arg1: i32) -> (i32, i32, i32) {
    %c0_i32 = arith.constant 0 : i32
    %c0_i32_0 = arith.constant 0 : i32
    return %arg0, %arg1, %c0_i32 : i32, i32, i32
  }
}

</mosaic_0001>

<llo_original>
// kernel: tpu_custom_call.1
$region0: #{tpu_custom_call.1}
  #allocation0 [shape = 'u32[]', space=smem, size = 0x4, offset = 0x4, fixed_abs, tag = 'smem constant byte address 0x4 - core index']
  #allocation1 [shape = 'u32[72,128]{1,0:T(1,128)}', space=vmem, size = 0x9000, scoped, tag = 'internal scratch']
  #allocation2 [shape = 'bf16[32,128]{1,0:T(8,128)(2,1)}', space=vmem, size = 0x2000, scoped, tag = 'scratch operand']
  #allocation3 [shape = 'bf16[32,896]{1,0:T(8,128)(2,1)}', space=vmem, size = 0xe000, scoped, tag = 'scratch operand']
  %s0 = inlined_call_operand.hbm [shape: bf16[2,48,128], index: 0, kind: input, shape index: {}]
  %s1 = inlined_call_operand.hbm [shape: bf16[2,48,128], index: 1, kind: input, shape index: {}]
  %s2 = inlined_call_operand.hbm [shape: bf16[2,48,128], index: 2, kind: input, shape index: {}]
  %s3 = inlined_call_operand.hbm [shape: bf16[896,128], index: 3, kind: input, shape index: {}]
  %s4 = inlined_call_operand.vmem [shape: f32[1,128], index: 4, kind: input, shape index: {}]
  %s5 = inlined_call_operand.vmem [shape: f32[1,128], index: 5, kind: input, shape index: {}]
  %s6 = inlined_call_operand.hbm [shape: bf16[640,128], index: 6, kind: input, shape index: {}]
  %s7 = inlined_call_operand.vmem [shape: f32[1,128], index: 7, kind: input, shape index: {}]
  %s8 = inlined_call_operand.vmem [shape: f32[1,128], index: 8, kind: input, shape index: {}]
  %s9 = inlined_call_operand.hbm [shape: bf16[384,128], index: 9, kind: input, shape index: {}]
  %s10 = inlined_call_operand.vmem [shape: f32[1,128], index: 10, kind: input, shape index: {}]
  %s11 = inlined_call_operand.vmem [shape: f32[1,128], index: 11, kind: input, shape index: {}]
  %s12 = inlined_call_operand.hbm [shape: bf16[128,128], index: 12, kind: input, shape index: {}]
  %s13 = inlined_call_operand.vmem [shape: f32[1,128], index: 13, kind: input, shape index: {}]
  %s14 = inlined_call_operand.vmem [shape: f32[1,128], index: 14, kind: input, shape index: {}]
  %s15 = inlined_call_operand.hbm [shape: f32[2,48,128], index: 15, kind: output, shape index: {}]
  %s16 = sld [smem:[#allocation0]]
  $region121: #{tpu_custom_call.1} parent=0
    _
  %s18 = ssub.s32 1, %s16
  %s19 = scalar_select 0, %s18, %s16
  $region1: #{tpu_custom_call.1} parent=0
    #allocation4 [shape = 'u8[4096]{0}', space=vmem, size = 0x1000, scoped, tag = 'input window, operand 0']
    #allocation5 [shape = 's32[2]{0}', space=sflag, size = 0x8, scoped, tag = 'scoped memory for tpu_custom_call.1']
    #allocation6 [shape = 's32[2]{0}', space=sflag, size = 0x8, scoped, tag = 'scoped memory for tpu_custom_call.1']
    #allocation7 [shape = 'u8[8192]{0}', space=vmem, size = 0x2000, scoped, tag = 'input window, operand 1']
    #allocation8 [shape = 's32[2]{0}', space=sflag, size = 0x8, scoped, tag = 'scoped memory for tpu_custom_call.1']
    #allocation9 [shape = 'u8[4096]{0}', space=vmem, size = 0x1000, scoped, tag = 'input window, operand 2']
    #allocation10 [shape = 'u8[229376]{0}', space=vmem, size = 0x38000, scoped, tag = 'input window, operand 3, single buffered']
    #allocation11 [shape = 's32[1]{0}', space=sflag, size = 0x4, scoped, tag = 'scoped memory for tpu_custom_call.1']
    #allocation12 [shape = 'u8[163840]{0}', space=vmem, size = 0x28000, scoped, tag = 'input window, operand 6, single buffered']
    #allocation13 [shape = 'u8[98304]{0}', space=vmem, size = 0x18000, scoped, tag = 'input window, operand 9, single buffered']
    #allocation14 [shape = 's32[1]{0}', space=sflag, size = 0x4, scoped, tag = 'scoped memory for tpu_custom_call.1']
    #allocation15 [shape = 'u8[32768]{0}', space=vmem, size = 0x8000, scoped, tag = 'input window, operand 12, single buffered']
    #allocation16 [shape = 'u8[16384]{0}', space=vmem, size = 0x4000, scoped, tag = 'output window, operand 0']
    %20 = vsyncpa [#allocation5], 0
    %s21 = scalar_lea.sflag [#allocation5], 1
    %22 = vsyncpa %s21, 0
    %23 = vsyncpa [#allocation8], 0
    %s24 = scalar_lea.sflag [#allocation8], 1
    %25 = vsyncpa %s24, 0
    %26 = vsyncpa [#allocation11], 0
    %27 = vsyncpa [#allocation14], 0
    %28 = vsyncpa [#allocation6], 0
    %s29 = scalar_lea.sflag [#allocation6], 1
    %30 = vsyncpa %s29, 0
    loop: start=0, step=1, limit=8
    $region2: #{tpu_custom_call.1} parent=1 // loop_pre_header
      _
    $region3: #{tpu_custom_call.1} parent=1 // loop_header
      %s32 = sphi 0, %s36
      %p33 = scmp.ge.s32.totalorder %s32, 8
      %s39 = sphi 0, %s51
      %s40 = sphi 0, %s47
      %s41 = sphi 0, %s39
      %s42 = sphi 0, %s40
      %s43 = sphi 0, %s41
      %s44 = sphi 0, %s42
      %s64 = sphi 0, %s66
      %s67 = sphi 0, %s64
      %s68 = sphi 0, %s67
      %s84 = sphi 0, %s68
      %s92 = sphi 0, %s94
      %s95 = sphi 0, %s92
      %s96 = sphi 0, %s95
      %s112 = sphi 0, %s96
      %s128 = sphi 0, %s130
      %s131 = sphi 0, %s128
      %s132 = sphi 0, %s131
      %s148 = sphi 0, %s132
      %s152 = sphi 0, %s152
      %s154 = sphi 0, %s152
      %s155 = sphi 0, %s154
      %s169 = sphi 0, %s155
      %s173 = sphi 0, %s173
      %s175 = sphi 0, %s173
      %s176 = sphi 0, %s175
      %s190 = sphi 0, %s176
      %s194 = sphi 0, %s194
      %s196 = sphi 0, %s194
      %s197 = sphi 0, %s196
      %s211 = sphi 0, %s197
      %s215 = sphi 0, %s215
      %s217 = sphi 0, %s215
      %s218 = sphi 0, %s217
      %s232 = sphi 0, %s218
      %s236 = sphi 0, %s236
      %s238 = sphi 0, %s236
      %s239 = sphi 0, %s238
      %s253 = sphi 0, %s239
      %s257 = sphi 0, %s257
      %s259 = sphi 0, %s257
      %s260 = sphi 0, %s259
      %s274 = sphi 0, %s260
      %s278 = sphi 0, %s278
      %s280 = sphi 0, %s278
      %s281 = sphi 0, %s280
      %s295 = sphi 0, %s281
      %s299 = sphi 0, %s299
      %s301 = sphi 0, %s299
      %s302 = sphi 0, %s301
      %s316 = sphi 0, %s302
      %s320 = sphi 0, %s320
      %s322 = sphi 0, %s320
      %s323 = sphi 0, %s322
      %s337 = sphi 0, %s323
      %s341 = sphi 0, %s341
      %s343 = sphi 0, %s341
      %s344 = sphi 0, %s343
      %s358 = sphi 0, %s344
      %s362 = sphi 0, %s362
      %s364 = sphi 0, %s362
      %s365 = sphi 0, %s364
      %s379 = sphi 0, %s365
      %s383 = sphi 0, %s383
      %s385 = sphi 0, %s383
      %s386 = sphi 0, %s385
      %s400 = sphi 0, %s386
      %s408 = sphi 0, %s410
      %s411 = sphi 0, %s408
      %s412 = sphi 0, %s411
      %s428 = sphi 0, %s412
    $region4: #{tpu_custom_call.1} parent=1 // loop_header_branch
      %35 = sbr.rel (%p33) target = $region8
    $region5: #{tpu_custom_call.1} parent=1 // loop_body
      %s37 = ssub.s32 %s32, 1
      %s38 = ssub.s32 %s32, 2
      %s45 = sadd.s32 1, %s40
      %p46 = scmp.ge.s32.totalorder %s45, 3
      %s47 = scalar_select %p46, 0, %s45
      %s48 = sadd.s32 1, %s39
      %s49 = scalar_select %p46, %s48, %s39
      %p50 = scmp.ge.s32.totalorder %s49, 2
      %s51 = scalar_select %p50, 0, %s49
      %s52 = smul.u32 %s40, 2
      %s53 = ssub.s32 %s52, 1
      %p54 = scmp.gt.s32.totalorder %s53, 0
      %s55 = scalar_select %p54, %s53, 0
      %s56 = smul.u32 %s47, 2
      %s57 = ssub.s32 %s56, 1
      %p58 = scmp.gt.s32.totalorder %s57, 0
      %s59 = scalar_select %p58, %s57, 0
      %s60 = ssub.s32 %s39, %s51
      %s61 = ssub.s32 %s55, %s59
      %s62 = sor.u32 %s60, %s61
      %p63 = scmp.eq.s32.totalorder %s62, 0
      %s65 = sadd.s32 %s64, 1
      %s66 = scalar_select %p63, %s64, %s65
      %p69 = pneg %p63
      %p70 = scmp.eq.s32.totalorder %s32, 5
      %p71 = por %p69, %p70
      %p72 = scmp.ne.s32.totalorder %s64, %s67
      %p73 = scmp.eq.s32.totalorder %s32, 0
      %p74 = por %p72, %p73
      %p75 = scmp.ne.s32.totalorder %s64, %s67
      %p76 = scmp.eq.s32.totalorder %s37, 5
      %p77 = por %p75, %p76
      %p78 = scmp.ne.s32.totalorder %s67, %s68
      %p79 = scmp.eq.s32.totalorder %s37, 0
      %p80 = por %p78, %p79
      %p81 = scmp.ne.s32.totalorder %s67, %s68
      %p82 = scmp.eq.s32.totalorder %s38, 5
      %p83 = por %p81, %p82
      %p85 = scmp.ne.s32.totalorder %s68, %s84
      %p86 = scmp.eq.s32.totalorder %s38, 0
      %p87 = por %p85, %p86
      %s88 = ssub.s32 %s39, %s51
      %s89 = ssub.s32 %s40, %s47
      %s90 = sor.u32 %s88, %s89
      %p91 = scmp.eq.s32.totalorder %s90, 0
      %s93 = sadd.s32 %s92, 1
      %s94 = scalar_select %p91, %s92, %s93
      %p97 = pneg %p91
      %p98 = scmp.eq.s32.totalorder %s32, 5
      %p99 = por %p97, %p98
      %p100 = scmp.ne.s32.totalorder %s92, %s95
      %p101 = scmp.eq.s32.totalorder %s32, 0
      %p102 = por %p100, %p101
      %p103 = scmp.ne.s32.totalorder %s92, %s95
      %p104 = scmp.eq.s32.totalorder %s37, 5
      %p105 = por %p103, %p104
      %p106 = scmp.ne.s32.totalorder %s95, %s96
      %p107 = scmp.eq.s32.totalorder %s37, 0
      %p108 = por %p106, %p107
      %p109 = scmp.ne.s32.totalorder %s95, %s96
      %p110 = scmp.eq.s32.totalorder %s38, 5
      %p111 = por %p109, %p110
      %p113 = scmp.ne.s32.totalorder %s96, %s112
      %p114 = scmp.eq.s32.totalorder %s38, 0
      %p115 = por %p113, %p114
      %s116 = sadd.s32 %s40, 1
      %s117 = smul.u32 %s116, 2
      %p118 = scmp.lt.s32.totalorder %s117, 5
      %s119 = scalar_select %p118, %s117, 5
      %s120 = sadd.s32 %s47, 1
      %s121 = smul.u32 %s120, 2
      %p122 = scmp.lt.s32.totalorder %s121, 5
      %s123 = scalar_select %p122, %s121, 5
      %s124 = ssub.s32 %s39, %s51
      %s125 = ssub.s32 %s119, %s123
      %s126 = sor.u32 %s124, %s125
      %p127 = scmp.eq.s32.totalorder %s126, 0
      %s129 = sadd.s32 %s128, 1
      %s130 = scalar_select %p127, %s128, %s129
      %p133 = pneg %p127
      %p134 = scmp.eq.s32.totalorder %s32, 5
      %p135 = por %p133, %p134
      %p136 = scmp.ne.s32.totalorder %s128, %s131
      %p137 = scmp.eq.s32.totalorder %s32, 0
      %p138 = por %p136, %p137
      %p139 = scmp.ne.s32.totalorder %s128, %s131
      %p140 = scmp.eq.s32.totalorder %s37, 5
      %p141 = por %p139, %p140
      %p142 = scmp.ne.s32.totalorder %s131, %s132
      %p143 = scmp.eq.s32.totalorder %s37, 0
      %p144 = por %p142, %p143
      %p145 = scmp.ne.s32.totalorder %s131, %s132
      %p146 = scmp.eq.s32.totalorder %s38, 5
      %p147 = por %p145, %p146
      %p149 = scmp.ne.s32.totalorder %s132, %s148
      %p150 = scmp.eq.s32.totalorder %s38, 0
      %p151 = por %p149, %p150
      %s153 = sadd.s32 %s152, 1
      %p156 = scmp.eq.s32.totalorder %s32, 5
      %p157 = scmp.ne.s32.totalorder %s152, %s154
      %p158 = scmp.eq.s32.totalorder %s32, 0
      %p159 = por %p157, %p158
      %p160 = scmp.ne.s32.totalorder %s152, %s154
      %p161 = scmp.eq.s32.totalorder %s37, 5
      %p162 = por %p160, %p161
      %p163 = scmp.ne.s32.totalorder %s154, %s155
      %p164 = scmp.eq.s32.totalorder %s37, 0
      %p165 = por %p163, %p164
      %p166 = scmp.ne.s32.totalorder %s154, %s155
      %p167 = scmp.eq.s32.totalorder %s38, 5
      %p168 = por %p166, %p167
      %p170 = scmp.ne.s32.totalorder %s155, %s169
      %p171 = scmp.eq.s32.totalorder %s38, 0
      %p172 = por %p170, %p171
      %s174 = sadd.s32 %s173, 1
      %p177 = scmp.eq.s32.totalorder %s32, 5
      %p178 = scmp.ne.s32.totalorder %s173, %s175
      %p179 = scmp.eq.s32.totalorder %s32, 0
      %p180 = por %p178, %p179
      %p181 = scmp.ne.s32.totalorder %s173, %s175
      %p182 = scmp.eq.s32.totalorder %s37, 5
      %p183 = por %p181, %p182
      %p184 = scmp.ne.s32.totalorder %s175, %s176
      %p185 = scmp.eq.s32.totalorder %s37, 0
      %p186 = por %p184, %p185
      %p187 = scmp.ne.s32.totalorder %s175, %s176
      %p188 = scmp.eq.s32.totalorder %s38, 5
      %p189 = por %p187, %p188
      %p191 = scmp.ne.s32.totalorder %s176, %s190
      %p192 = scmp.eq.s32.totalorder %s38, 0
      %p193 = por %p191, %p192
      %s195 = sadd.s32 %s194, 1
      %p198 = scmp.eq.s32.totalorder %s32, 5
      %p199 = scmp.ne.s32.totalorder %s194, %s196
      %p200 = scmp.eq.s32.totalorder %s32, 0
      %p201 = por %p199, %p200
      %p202 = scmp.ne.s32.totalorder %s194, %s196
      %p203 = scmp.eq.s32.totalorder %s37, 5
      %p204 = por %p202, %p203
      %p205 = scmp.ne.s32.totalorder %s196, %s197
      %p206 = scmp.eq.s32.totalorder %s37, 0
      %p207 = por %p205, %p206
      %p208 = scmp.ne.s32.totalorder %s196, %s197
      %p209 = scmp.eq.s32.totalorder %s38, 5
      %p210 = por %p208, %p209
      %p212 = scmp.ne.s32.totalorder %s197, %s211
      %p213 = scmp.eq.s32.totalorder %s38, 0
      %p214 = por %p212, %p213
      %s216 = sadd.s32 %s215, 1
      %p219 = scmp.eq.s32.totalorder %s32, 5
      %p220 = scmp.ne.s32.totalorder %s215, %s217
      %p221 = scmp.eq.s32.totalorder %s32, 0
      %p222 = por %p220, %p221
      %p223 = scmp.ne.s32.totalorder %s215, %s217
      %p224 = scmp.eq.s32.totalorder %s37, 5
      %p225 = por %p223, %p224
      %p226 = scmp.ne.s32.totalorder %s217, %s218
      %p227 = scmp.eq.s32.totalorder %s37, 0
      %p228 = por %p226, %p227
      %p229 = scmp.ne.s32.totalorder %s217, %s218
      %p230 = scmp.eq.s32.totalorder %s38, 5
      %p231 = por %p229, %p230
      %p233 = scmp.ne.s32.totalorder %s218, %s232
      %p234 = scmp.eq.s32.totalorder %s38, 0
      %p235 = por %p233, %p234
      %s237 = sadd.s32 %s236, 1
      %p240 = scmp.eq.s32.totalorder %s32, 5
      %p241 = scmp.ne.s32.totalorder %s236, %s238
      %p242 = scmp.eq.s32.totalorder %s32, 0
      %p243 = por %p241, %p242
      %p244 = scmp.ne.s32.totalorder %s236, %s238
      %p245 = scmp.eq.s32.totalorder %s37, 5
      %p246 = por %p244, %p245
      %p247 = scmp.ne.s32.totalorder %s238, %s239
      %p248 = scmp.eq.s32.totalorder %s37, 0
      %p249 = por %p247, %p248
      %p250 = scmp.ne.s32.totalorder %s238, %s239
      %p251 = scmp.eq.s32.totalorder %s38, 5
      %p252 = por %p250, %p251
      %p254 = scmp.ne.s32.totalorder %s239, %s253
      %p255 = scmp.eq.s32.totalorder %s38, 0
      %p256 = por %p254, %p255
      %s258 = sadd.s32 %s257, 1
      %p261 = scmp.eq.s32.totalorder %s32, 5
      %p262 = scmp.ne.s32.totalorder %s257, %s259
      %p263 = scmp.eq.s32.totalorder %s32, 0
      %p264 = por %p262, %p263
      %p265 = scmp.ne.s32.totalorder %s257, %s259
      %p266 = scmp.eq.s32.totalorder %s37, 5
      %p267 = por %p265, %p266
      %p268 = scmp.ne.s32.totalorder %s259, %s260
      %p269 = scmp.eq.s32.totalorder %s37, 0
      %p270 = por %p268, %p269
      %p271 = scmp.ne.s32.totalorder %s259, %s260
      %p272 = scmp.eq.s32.totalorder %s38, 5
      %p273 = por %p271, %p272
      %p275 = scmp.ne.s32.totalorder %s260, %s274
      %p276 = scmp.eq.s32.totalorder %s38, 0
      %p277 = por %p275, %p276
      %s279 = sadd.s32 %s278, 1
      %p282 = scmp.eq.s32.totalorder %s32, 5
      %p283 = scmp.ne.s32.totalorder %s278, %s280
      %p284 = scmp.eq.s32.totalorder %s32, 0
      %p285 = por %p283, %p284
      %p286 = scmp.ne.s32.totalorder %s278, %s280
      %p287 = scmp.eq.s32.totalorder %s37, 5
      %p288 = por %p286, %p287
      %p289 = scmp.ne.s32.totalorder %s280, %s281
      %p290 = scmp.eq.s32.totalorder %s37, 0
      %p291 = por %p289, %p290
      %p292 = scmp.ne.s32.totalorder %s280, %s281
      %p293 = scmp.eq.s32.totalorder %s38, 5
      %p294 = por %p292, %p293
      %p296 = scmp.ne.s32.totalorder %s281, %s295
      %p297 = scmp.eq.s32.totalorder %s38, 0
      %p298 = por %p296, %p297
      %s300 = sadd.s32 %s299, 1
      %p303 = scmp.eq.s32.totalorder %s32, 5
      %p304 = scmp.ne.s32.totalorder %s299, %s301
      %p305 = scmp.eq.s32.totalorder %s32, 0
      %p306 = por %p304, %p305
      %p307 = scmp.ne.s32.totalorder %s299, %s301
      %p308 = scmp.eq.s32.totalorder %s37, 5
      %p309 = por %p307, %p308
      %p310 = scmp.ne.s32.totalorder %s301, %s302
      %p311 = scmp.eq.s32.totalorder %s37, 0
      %p312 = por %p310, %p311
      %p313 = scmp.ne.s32.totalorder %s301, %s302
      %p314 = scmp.eq.s32.totalorder %s38, 5
      %p315 = por %p313, %p314
      %p317 = scmp.ne.s32.totalorder %s302, %s316
      %p318 = scmp.eq.s32.totalorder %s38, 0
      %p319 = por %p317, %p318
      %s321 = sadd.s32 %s320, 1
      %p324 = scmp.eq.s32.totalorder %s32, 5
      %p325 = scmp.ne.s32.totalorder %s320, %s322
      %p326 = scmp.eq.s32.totalorder %s32, 0
      %p327 = por %p325, %p326
      %p328 = scmp.ne.s32.totalorder %s320, %s322
      %p329 = scmp.eq.s32.totalorder %s37, 5
      %p330 = por %p328, %p329
      %p331 = scmp.ne.s32.totalorder %s322, %s323
      %p332 = scmp.eq.s32.totalorder %s37, 0
      %p333 = por %p331, %p332
      %p334 = scmp.ne.s32.totalorder %s322, %s323
      %p335 = scmp.eq.s32.totalorder %s38, 5
      %p336 = por %p334, %p335
      %p338 = scmp.ne.s32.totalorder %s323, %s337
      %p339 = scmp.eq.s32.totalorder %s38, 0
      %p340 = por %p338, %p339
      %s342 = sadd.s32 %s341, 1
      %p345 = scmp.eq.s32.totalorder %s32, 5
      %p346 = scmp.ne.s32.totalorder %s341, %s343
      %p347 = scmp.eq.s32.totalorder %s32, 0
      %p348 = por %p346, %p347
      %p349 = scmp.ne.s32.totalorder %s341, %s343
      %p350 = scmp.eq.s32.totalorder %s37, 5
      %p351 = por %p349, %p350
      %p352 = scmp.ne.s32.totalorder %s343, %s344
      %p353 = scmp.eq.s32.totalorder %s37, 0
      %p354 = por %p352, %p353
      %p355 = scmp.ne.s32.totalorder %s343, %s344
      %p356 = scmp.eq.s32.totalorder %s38, 5
      %p357 = por %p355, %p356
      %p359 = scmp.ne.s32.totalorder %s344, %s358
      %p360 = scmp.eq.s32.totalorder %s38, 0
      %p361 = por %p359, %p360
      %s363 = sadd.s32 %s362, 1
      %p366 = scmp.eq.s32.totalorder %s32, 5
      %p367 = scmp.ne.s32.totalorder %s362, %s364
      %p368 = scmp.eq.s32.totalorder %s32, 0
      %p369 = por %p367, %p368
      %p370 = scmp.ne.s32.totalorder %s362, %s364
      %p371 = scmp.eq.s32.totalorder %s37, 5
      %p372 = por %p370, %p371
      %p373 = scmp.ne.s32.totalorder %s364, %s365
      %p374 = scmp.eq.s32.totalorder %s37, 0
      %p375 = por %p373, %p374
      %p376 = scmp.ne.s32.totalorder %s364, %s365
      %p377 = scmp.eq.s32.totalorder %s38, 5
      %p378 = por %p376, %p377
      %p380 = scmp.ne.s32.totalorder %s365, %s379
      %p381 = scmp.eq.s32.totalorder %s38, 0
      %p382 = por %p380, %p381
      %s384 = sadd.s32 %s383, 1
      %p387 = scmp.eq.s32.totalorder %s32, 5
      %p388 = scmp.ne.s32.totalorder %s383, %s385
      %p389 = scmp.eq.s32.totalorder %s32, 0
      %p390 = por %p388, %p389
      %p391 = scmp.ne.s32.totalorder %s383, %s385
      %p392 = scmp.eq.s32.totalorder %s37, 5
      %p393 = por %p391, %p392
      %p394 = scmp.ne.s32.totalorder %s385, %s386
      %p395 = scmp.eq.s32.totalorder %s37, 0
      %p396 = por %p394, %p395
      %p397 = scmp.ne.s32.totalorder %s385, %s386
      %p398 = scmp.eq.s32.totalorder %s38, 5
      %p399 = por %p397, %p398
      %p401 = scmp.ne.s32.totalorder %s386, %s400
      %p402 = scmp.eq.s32.totalorder %s38, 0
      %p403 = por %p401, %p402
      %s404 = ssub.s32 %s39, %s51
      %s405 = ssub.s32 %s40, %s47
      %s406 = sor.u32 %s404, %s405
      %p407 = scmp.eq.s32.totalorder %s406, 0
      %s409 = sadd.s32 %s408, 1
      %s410 = scalar_select %p407, %s408, %s409
      %p413 = pneg %p407
      %p414 = scmp.eq.s32.totalorder %s32, 5
      %p415 = por %p413, %p414
      %p416 = scmp.ne.s32.totalorder %s408, %s411
      %p417 = scmp.eq.s32.totalorder %s32, 0
      %p418 = por %p416, %p417
      %p419 = scmp.ne.s32.totalorder %s408, %s411
      %p420 = scmp.eq.s32.totalorder %s37, 5
      %p421 = por %p419, %p420
      %p422 = scmp.ne.s32.totalorder %s411, %s412
      %p423 = scmp.eq.s32.totalorder %s37, 0
      %p424 = por %p422, %p423
      %p425 = scmp.ne.s32.totalorder %s411, %s412
      %p426 = scmp.eq.s32.totalorder %s38, 5
      %p427 = por %p425, %p426
      %p429 = scmp.ne.s32.totalorder %s412, %s428
      %p430 = scmp.eq.s32.totalorder %s38, 0
      %p431 = por %p429, %p430
      %p432 = scmp.le.s32.totalorder 1, %s32
      %p433 = scmp.lt.s32.totalorder %s32, 7
      %p434 = pnand %p432, %p433
      %p435 = pneg %p434
      // Predicated region
      $region9: #{tpu_custom_call.1} parent=5 // pred_check
        _
      $region10: #{tpu_custom_call.1} parent=5 // pred_check_branch
        %437 = sbr.rel (%p434) target = $region12
      $region11: #{tpu_custom_call.1} parent=5 // pred_region
        %s438 = ssub.s32 %s32, 1
        // Predicated region
        $region13: #{tpu_custom_call.1} parent=11 // pred_check
          %p439 = pneg %p165
        $region14: #{tpu_custom_call.1} parent=11 // pred_check_branch
          %441 = sbr.rel (%p439) target = $region16
        $region15: #{tpu_custom_call.1} parent=11 // pred_region
          %443 = vsyncadd [#allocation11], 0
          %s444 = sshll.u32 %s3, 4
          %s445 = int_to_ptr.hbm [resolvable:$true] %s444
          %s446 = sshll.u32 [#allocation10], 4
          %s447 = int_to_ptr.vmem [resolvable:$true] %s446
          %452 = dma.hbm_to_vmem [thread:$0]  %s445, 7168, %s447, [#allocation11], 64, 64, 4
        $region16: #{tpu_custom_call.1} parent=11 // pred_fallthru
          _
        // Predicated region
        $region17: #{tpu_custom_call.1} parent=11 // pred_check
          %p453 = pneg %p186
        $region18: #{tpu_custom_call.1} parent=11 // pred_check_branch
          %455 = sbr.rel (%p453) target = $region20
        $region19: #{tpu_custom_call.1} parent=11 // pred_region
          _
        $region20: #{tpu_custom_call.1} parent=11 // pred_fallthru
          _
        // Predicated region
        $region21: #{tpu_custom_call.1} parent=11 // pred_check
          %p456 = pneg %p207
        $region22: #{tpu_custom_call.1} parent=11 // pred_check_branch
          %458 = sbr.rel (%p456) target = $region24
        $region23: #{tpu_custom_call.1} parent=11 // pred_region
          _
        $region24: #{tpu_custom_call.1} parent=11 // pred_fallthru
          _
        // Predicated region
        $region25: #{tpu_custom_call.1} parent=11 // pred_check
          %p459 = pneg %p228
        $region26: #{tpu_custom_call.1} parent=11 // pred_check_branch
          %461 = sbr.rel (%p459) target = $region28
        $region27: #{tpu_custom_call.1} parent=11 // pred_region
          %463 = vsyncadd [#allocation11], 0
          %s464 = sshll.u32 %s6, 4
          %s465 = int_to_ptr.hbm [resolvable:$true] %s464
          %s466 = sshll.u32 [#allocation12], 4
          %s467 = int_to_ptr.vmem [resolvable:$true] %s466
          %472 = dma.hbm_to_vmem [thread:$0]  %s465, 5120, %s467, [#allocation11], 64, 64, 4
        $region28: #{tpu_custom_call.1} parent=11 // pred_fallthru
          _
        // Predicated region
        $region29: #{tpu_custom_call.1} parent=11 // pred_check
          %p473 = pneg %p249
        $region30: #{tpu_custom_call.1} parent=11 // pred_check_branch
          %475 = sbr.rel (%p473) target = $region32
        $region31: #{tpu_custom_call.1} parent=11 // pred_region
          _
        $region32: #{tpu_custom_call.1} parent=11 // pred_fallthru
          _
        // Predicated region
        $region33: #{tpu_custom_call.1} parent=11 // pred_check
          %p476 = pneg %p270
        $region34: #{tpu_custom_call.1} parent=11 // pred_check_branch
          %478 = sbr.rel (%p476) target = $region36
        $region35: #{tpu_custom_call.1} parent=11 // pred_region
          _
        $region36: #{tpu_custom_call.1} parent=11 // pred_fallthru
          _
        // Predicated region
        $region37: #{tpu_custom_call.1} parent=11 // pred_check
          %p479 = pneg %p291
        $region38: #{tpu_custom_call.1} parent=11 // pred_check_branch
          %481 = sbr.rel (%p479) target = $region40
        $region39: #{tpu_custom_call.1} parent=11 // pred_region
          %483 = vsyncadd [#allocation14], 0
          %s484 = sshll.u32 %s9, 4
          %s485 = int_to_ptr.hbm [resolvable:$true] %s484
          %s486 = sshll.u32 [#allocation13], 4
          %s487 = int_to_ptr.vmem [resolvable:$true] %s486
          %492 = dma.hbm_to_vmem [thread:$0]  %s485, 3072, %s487, [#allocation14], 64, 64, 4
        $region40: #{tpu_custom_call.1} parent=11 // pred_fallthru
          _
        // Predicated region
        $region41: #{tpu_custom_call.1} parent=11 // pred_check
          %p493 = pneg %p312
        $region42: #{tpu_custom_call.1} parent=11 // pred_check_branch
          %495 = sbr.rel (%p493) target = $region44
        $region43: #{tpu_custom_call.1} parent=11 // pred_region
          _
        $region44: #{tpu_custom_call.1} parent=11 // pred_fallthru
          _
        // Predicated region
        $region45: #{tpu_custom_call.1} parent=11 // pred_check
          %p496 = pneg %p333
        $region46: #{tpu_custom_call.1} parent=11 // pred_check_branch
          %498 = sbr.rel (%p496) target = $region48
        $region47: #{tpu_custom_call.1} parent=11 // pred_region
          _
        $region48: #{tpu_custom_call.1} parent=11 // pred_fallthru
          _
        // Predicated region
        $region49: #{tpu_custom_call.1} parent=11 // pred_check
          %p499 = pneg %p354
        $region50: #{tpu_custom_call.1} parent=11 // pred_check_branch
          %501 = sbr.rel (%p499) target = $region52
        $region51: #{tpu_custom_call.1} parent=11 // pred_region
          %503 = vsyncadd [#allocation14], 0
          %s504 = sshll.u32 %s12, 4
          %s505 = int_to_ptr.hbm [resolvable:$true] %s504
          %s506 = sshll.u32 [#allocation15], 4
          %s507 = int_to_ptr.vmem [resolvable:$true] %s506
          %512 = dma.hbm_to_vmem [thread:$0]  %s505, 1024, %s507, [#allocation14], 64, 64, 4
        $region52: #{tpu_custom_call.1} parent=11 // pred_fallthru
          _
        // Predicated region
        $region53: #{tpu_custom_call.1} parent=11 // pred_check
          %p513 = pneg %p375
        $region54: #{tpu_custom_call.1} parent=11 // pred_check_branch
          %515 = sbr.rel (%p513) target = $region56
        $region55: #{tpu_custom_call.1} parent=11 // pred_region
          _
        $region56: #{tpu_custom_call.1} parent=11 // pred_fallthru
          _
        // Predicated region
        $region57: #{tpu_custom_call.1} parent=11 // pred_check
          %p516 = pneg %p396
        $region58: #{tpu_custom_call.1} parent=11 // pred_check_branch
          %518 = sbr.rel (%p516) target = $region60
        $region59: #{tpu_custom_call.1} parent=11 // pred_region
          _
        $region60: #{tpu_custom_call.1} parent=11 // pred_fallthru
          _
      $region12: #{tpu_custom_call.1} parent=5 // pred_fallthru
        _
      %p519 = scmp.lt.s32.totalorder %s32, 6
      // Predicated region
      $region61: #{tpu_custom_call.1} parent=5 // pred_check
        %p520 = pneg %p519
      $region62: #{tpu_custom_call.1} parent=5 // pred_check_branch
        %522 = sbr.rel (%p520) target = $region64
      $region63: #{tpu_custom_call.1} parent=5 // pred_region
        // Predicated region
        $region65: #{tpu_custom_call.1} parent=63 // pred_check
          %p523 = pneg %p74
        $region66: #{tpu_custom_call.1} parent=63 // pred_check_branch
          %525 = sbr.rel (%p523) target = $region68
        $region67: #{tpu_custom_call.1} parent=63 // pred_region
          %s526 = sand.u32 %s64, 1
          %s527 = scalar_lea.sflag [#allocation5], %s526
          %s528 = sand.u32 %s64, 1
          %s529 = smul.addr %s528, 4
          %s530 = scalar_lea.vmem [#allocation4], %s529
          %s531 = smul.u32 %s40, 2
          %s532 = ssub.s32 %s531, 1
          %p533 = scmp.gt.s32.totalorder %s532, 0
          %s534 = scalar_select %p533, %s532, 0
          %536 = vsyncadd %s527, 0
          %s537 = smul.addr %s39, 6
          %s538 = sadd.s32 %s534, %s537
          %s539 = smul.addr %s538, 4
          %s540 = scalar_lea.hbm %s0, %s539
          %s542 = sshll.u32 %s540, 4
          %s543 = int_to_ptr.hbm [resolvable:$true] %s542
          %s544 = sshll.u32 %s530, 4
          %s545 = int_to_ptr.vmem [resolvable:$true] %s544
          %547 = dma.hbm_to_vmem [thread:$0]  %s543, 64, %s545, %s527
        $region68: #{tpu_custom_call.1} parent=63 // pred_fallthru
          _
        // Predicated region
        $region69: #{tpu_custom_call.1} parent=63 // pred_check
          %p548 = pneg %p102
        $region70: #{tpu_custom_call.1} parent=63 // pred_check_branch
          %550 = sbr.rel (%p548) target = $region72
        $region71: #{tpu_custom_call.1} parent=63 // pred_region
          %s551 = sand.u32 %s32, 1
          %s552 = scalar_lea.sflag [#allocation8], %s551
          %s553 = sand.u32 %s92, 1
          %s554 = smul.addr %s553, 8
          %s555 = scalar_lea.vmem [#allocation7], %s554
          %s556 = smul.u32 2, %s40
          %558 = vsyncadd %s552, 0
          %s559 = smul.addr %s39, 6
          %s560 = sadd.s32 %s556, %s559
          %s561 = smul.addr %s560, 4
          %s562 = scalar_lea.hbm %s1, %s561
          %s563 = sshll.u32 %s562, 4
          %s564 = int_to_ptr.hbm [resolvable:$true] %s563
          %s565 = sshll.u32 %s555, 4
          %s566 = int_to_ptr.vmem [resolvable:$true] %s565
          %571 = dma.hbm_to_vmem [thread:$0]  %s564, 128, %s566, %s552, 64, 64, 4
        $region72: #{tpu_custom_call.1} parent=63 // pred_fallthru
          _
        // Predicated region
        $region73: #{tpu_custom_call.1} parent=63 // pred_check
          %p572 = pneg %p138
        $region74: #{tpu_custom_call.1} parent=63 // pred_check_branch
          %574 = sbr.rel (%p572) target = $region76
        $region75: #{tpu_custom_call.1} parent=63 // pred_region
          %s575 = sand.u32 %s32, 1
          %s576 = scalar_lea.sflag [#allocation8], %s575
          %s577 = sand.u32 %s128, 1
          %s578 = smul.addr %s577, 4
          %s579 = scalar_lea.vmem [#allocation9], %s578
          %s580 = sadd.s32 %s40, 1
          %s581 = smul.u32 %s580, 2
          %p582 = scmp.lt.s32.totalorder %s581, 5
          %s583 = scalar_select %p582, %s581, 5
          %585 = vsyncadd %s576, 0
          %s586 = smul.addr %s39, 6
          %s587 = sadd.s32 %s583, %s586
          %s588 = smul.addr %s587, 4
          %s589 = scalar_lea.hbm %s2, %s588
          %s591 = sshll.u32 %s589, 4
          %s592 = int_to_ptr.hbm [resolvable:$true] %s591
          %s593 = sshll.u32 %s579, 4
          %s594 = int_to_ptr.vmem [resolvable:$true] %s593
          %596 = dma.hbm_to_vmem [thread:$0]  %s592, 64, %s594, %s576
        $region76: #{tpu_custom_call.1} parent=63 // pred_fallthru
          _
      $region64: #{tpu_custom_call.1} parent=5 // pred_fallthru
        _
      %p597 = scmp.le.s32.totalorder 1, %s32
      %p598 = scmp.lt.s32.totalorder %s32, 7
      %p599 = pnand %p597, %p598
      %p600 = pneg %p599
      // Predicated region
      $region77: #{tpu_custom_call.1} parent=5 // pred_check
        _
      $region78: #{tpu_custom_call.1} parent=5 // pred_check_branch
        %602 = sbr.rel (%p599) target = $region80
      $region79: #{tpu_custom_call.1} parent=5 // pred_region
        %s603 = ssub.s32 %s32, 1
        %s604 = sand.u32 %s67, 1
        %s605 = scalar_lea.sflag [#allocation5], %s604
        %s606 = sand.u32 %s67, 1
        %s607 = smul.addr %s606, 4
        %s608 = scalar_lea.vmem [#allocation4], %s607
        // Predicated region
        $region81: #{tpu_custom_call.1} parent=79 // pred_check
          %p609 = pneg %p80
        $region82: #{tpu_custom_call.1} parent=79 // pred_check_branch
          %611 = sbr.rel (%p609) target = $region84
        $region83: #{tpu_custom_call.1} parent=79 // pred_region
          %613 = dma.done %s605, 64
        $region84: #{tpu_custom_call.1} parent=79 // pred_fallthru
          _
        %s614 = sand.u32 %s37, 1
        %s615 = scalar_lea.sflag [#allocation8], %s614
        %s616 = sand.u32 %s95, 1
        %s617 = smul.addr %s616, 8
        %s618 = scalar_lea.vmem [#allocation7], %s617
        // Predicated region
        $region85: #{tpu_custom_call.1} parent=79 // pred_check
          %p619 = pneg %p108
        $region86: #{tpu_custom_call.1} parent=79 // pred_check_branch
          %621 = sbr.rel (%p619) target = $region88
        $region87: #{tpu_custom_call.1} parent=79 // pred_region
          %623 = dma.done %s615, 128
        $region88: #{tpu_custom_call.1} parent=79 // pred_fallthru
          _
        %s624 = sand.u32 %s37, 1
        %s625 = scalar_lea.sflag [#allocation8], %s624
        %s626 = sand.u32 %s131, 1
        %s627 = smul.addr %s626, 4
        %s628 = scalar_lea.vmem [#allocation9], %s627
        // Predicated region
        $region89: #{tpu_custom_call.1} parent=79 // pred_check
          %p629 = pneg %p144
        $region90: #{tpu_custom_call.1} parent=79 // pred_check_branch
          %631 = sbr.rel (%p629) target = $region92
        $region91: #{tpu_custom_call.1} parent=79 // pred_region
          %633 = dma.done %s625, 64
        $region92: #{tpu_custom_call.1} parent=79 // pred_fallthru
          _
        // Predicated region
        $region93: #{tpu_custom_call.1} parent=79 // pred_check
          %p634 = pneg %p165
        $region94: #{tpu_custom_call.1} parent=79 // pred_check_branch
          %636 = sbr.rel (%p634) target = $region96
        $region95: #{tpu_custom_call.1} parent=79 // pred_region
          %638 = dma.done [#allocation11], 7168
        $region96: #{tpu_custom_call.1} parent=79 // pred_fallthru
          _
        // Predicated region
        $region97: #{tpu_custom_call.1} parent=79 // pred_check
          %p639 = pneg %p228
        $region98: #{tpu_custom_call.1} parent=79 // pred_check_branch
          %641 = sbr.rel (%p639) target = $region100
        $region99: #{tpu_custom_call.1} parent=79 // pred_region
          %643 = dma.done [#allocation11], 5120
        $region100: #{tpu_custom_call.1} parent=79 // pred_fallthru
          _
        // Predicated region
        $region101: #{tpu_custom_call.1} parent=79 // pred_check
          %p644 = pneg %p291
        $region102: #{tpu_custom_call.1} parent=79 // pred_check_branch
          %646 = sbr.rel (%p644) target = $region104
        $region103: #{tpu_custom_call.1} parent=79 // pred_region
          %648 = dma.done [#allocation14], 3072
        $region104: #{tpu_custom_call.1} parent=79 // pred_fallthru
          _
        // Predicated region
        $region105: #{tpu_custom_call.1} parent=79 // pred_check
          %p649 = pneg %p354
        $region106: #{tpu_custom_call.1} parent=79 // pred_check_branch
          %651 = sbr.rel (%p649) target = $region108
        $region107: #{tpu_custom_call.1} parent=79 // pred_region
          %653 = dma.done [#allocation14], 1024
        $region108: #{tpu_custom_call.1} parent=79 // pred_fallthru
          _
        %s654 = sand.u32 %s67, 1
        %s655 = scalar_lea.sflag [#allocation5], %s654
        %s656 = sand.u32 %s67, 1
        %s657 = smul.addr %s656, 4
        %s658 = scalar_lea.vmem [#allocation4], %s657
        %p659 = pneg %p80
        %p660 = pneg %p77
        %s661 = sand.u32 %s37, 1
        %s662 = scalar_lea.sflag [#allocation8], %s661
        %s663 = sand.u32 %s95, 1
        %s664 = smul.addr %s663, 8
        %s665 = scalar_lea.vmem [#allocation7], %s664
        %p666 = pneg %p108
        %p667 = pneg %p105
        %s668 = sand.u32 %s37, 1
        %s669 = scalar_lea.sflag [#allocation8], %s668
        %s670 = sand.u32 %s131, 1
        %s671 = smul.addr %s670, 4
        %s672 = scalar_lea.vmem [#allocation9], %s671
        %p673 = pneg %p144
        %p674 = pneg %p141
        %p675 = pneg %p165
        %p676 = pneg %p162
        %p677 = pneg %p186
        %p678 = pneg %p183
        %p679 = pneg %p207
        %p680 = pneg %p204
        %p681 = pneg %p228
        %p682 = pneg %p225
        %p683 = pneg %p249
        %p684 = pneg %p246
        %p685 = pneg %p270
        %p686 = pneg %p267
        %p687 = pneg %p291
        %p688 = pneg %p288
        %p689 = pneg %p312
        %p690 = pneg %p309
        %p691 = pneg %p333
        %p692 = pneg %p330
        %p693 = pneg %p354
        %p694 = pneg %p351
        %p695 = pneg %p375
        %p696 = pneg %p372
        %p697 = pneg %p396
        %p698 = pneg %p393
        %p699 = pneg %p424
        %p700 = pneg %p421
        %s701 = sand.u32 %s411, 1
        %s702 = scalar_lea.sflag [#allocation6], %s701
        %s703 = sand.u32 %s411, 1
        %s704 = smul.addr %s703, 16
        %s705 = scalar_lea.vmem [#allocation16], %s704
        %s706 = smul.u32 %s42, 2
        %s707 = ssub.s32 %s706, 1
        %p708 = scmp.gt.s32.totalorder %s707, 0
        %s709 = scalar_select %p708, %s707, 0
        %s710 = smul.u32 2, %s42
        %s711 = sadd.s32 %s42, 1
        %s712 = smul.u32 %s711, 2
        %p713 = scmp.lt.s32.totalorder %s712, 5
        %s714 = scalar_select %p713, %s712, 5
        %s715 = smul.u32 2, %s42
        %s717 = smul.u32 %s42, 16
        %p718 = scmp.gt.s32.totalorder %s42, 0
        %v719 = vld [vmem:[%s608] sm:$0xf]
        %s720 = scalar_select %p718, 1, 0
        %v721 = vstv %s720
        %vm722 = vcmp.eq.s32.totalorder %v721, 1
        %v723 = vsel %vm722, %v719, 0
        %724 = vst [vmem:[#allocation2] sm:$0xf] %v723
        %v725 = vld [vmem:[%s618] sm:$0xf]
        %v726 = vld [vmem:[%s618 + $0x4] sm:$0xf]
        %727 = vst [vmem:[#allocation2 + $0x4] sm:$0xf] %v725
        %728 = vst [vmem:[#allocation2 + $0x8] sm:$0xf] %v726
        %p729 = scmp.lt.s32.totalorder %s42, 2
        %v730 = vld [vmem:[%s628] sm:$0xf]
        %s731 = scalar_select %p729, 1, 0
        %v732 = vstv %s731
        %vm733 = vcmp.eq.s32.totalorder %v732, 1
        %v734 = vsel %vm733, %v730, 0
        %735 = vst [vmem:[#allocation2 + $0xc] sm:$0xf] %v734
        %v736 = vld [vmem:[#allocation2] sm:$0xf]
        %v737 = vld [vmem:[#allocation2 + $0x4] sm:$0xf]
        %v738 = vld [vmem:[#allocation2 + $0x8] sm:$0xf]
        %v739 = vld [vmem:[#allocation2 + $0xc] sm:$0x1]
        %740 = vst [vmem:[#allocation3] sm:$0xf] %v736
        %741 = vst [vmem:[#allocation3 + $0x1c] sm:$0xf] %v737
        %742 = vst [vmem:[#allocation3 + $0x38] sm:$0xf] %v738
        %743 = vst [vmem:[#allocation3 + $0x54] sm:$0x1] %v739
        %v744 = vld [vmem:[#allocation2] sm:$0xf]
        %v745 = vld [vmem:[#allocation2 + $0x4] sm:$0xf]
        %v746 = vld [vmem:[#allocation2 + $0x8] sm:$0xf]
        %v747 = vld [vmem:[#allocation2 + $0xc] sm:$0x3]
        %vm748 = vsmask.f32 3328
        %vm749 = vsmask.f32 7440
        %vm750 = vmor %vm748, %vm749
        %v752 = vshrl.u32 %v744, 16
        %v754 = vrot.slane %v752, 4
        %v755 = vshll.u32 %v744, 16
        %v757 = vrot.slane %v755, 5
        %v758 = vor.u32 %v754, %v757
        %v759 = vrot.slane %v758, 4
        %v761 = vshll.u32 %v745, 16
        %v763 = vrot.slane %v761, 5
        %v764 = vsel %vm750, %v759, %v763
        %v765 = vshrl.u32 %v745, 16
        %v767 = vrot.slane %v765, 4
        %v768 = vor.u32 %v767, %v763
        %v769 = vrot.slane %v768, 4
        %v771 = vshll.u32 %v746, 16
        %v773 = vrot.slane %v771, 5
        %v774 = vsel %vm750, %v769, %v773
        %v775 = vshrl.u32 %v746, 16
        %v777 = vrot.slane %v775, 4
        %v778 = vor.u32 %v777, %v773
        %v779 = vrot.slane %v778, 4
        %v781 = vshll.u32 %v747, 16
        %v783 = vrot.slane %v781, 5
        %v784 = vsel %vm750, %v779, %v783
        %v785 = vshrl.u32 %v747, 16
        %v787 = vrot.slane %v785, 4
        %v788 = vor.u32 %v787, %v783
        %v789 = vrot.slane %v788, 4
        %794 = vst [vmem:[#allocation3 + $0x4] sm:$0xf] %v764
        %795 = vst [vmem:[#allocation3 + $0x20] sm:$0xf] %v774
        %796 = vst [vmem:[#allocation3 + $0x3c] sm:$0xf] %v784
        %797 = vst [vmem:[#allocation3 + $0x58] sm:$0x1] %v789
        %v798 = vld [vmem:[#allocation2] sm:$0xe]
        %v799 = vld [vmem:[#allocation2 + $0x4] sm:$0xf]
        %v800 = vld [vmem:[#allocation2 + $0x8] sm:$0xf]
        %v801 = vld [vmem:[#allocation2 + $0xc] sm:$0x3]
        %vm806 = vcmask 1042432
        %vm807 = vcmask 1046532
        %vm808 = vmor %vm806, %vm807
        %v809 = vrot.slane %v798, 5
        %v810 = vrot.slane %v809, 4
        %v811 = vrot.slane %v799, 5
        %v812 = vsel %vm808, %v810, %v811
        %v813 = vrot.slane %v811, 4
        %v814 = vrot.slane %v800, 5
        %v815 = vsel %vm808, %v813, %v814
        %v816 = vrot.slane %v814, 4
        %v817 = vrot.slane %v801, 5
        %v818 = vsel %vm808, %v816, %v817
        %v819 = vrot.slane %v817, 4
        %824 = vst [vmem:[#allocation3 + $0x8] sm:$0xf] %v812
        %825 = vst [vmem:[#allocation3 + $0x24] sm:$0xf] %v815
        %826 = vst [vmem:[#allocation3 + $0x40] sm:$0xf] %v818
        %827 = vst [vmem:[#allocation3 + $0x5c] sm:$0x1] %v819
        %v828 = vld [vmem:[#allocation2] sm:$0xe]
        %v829 = vld [vmem:[#allocation2 + $0x4] sm:$0xf]
        %v830 = vld [vmem:[#allocation2 + $0x8] sm:$0xf]
        %v831 = vld [vmem:[#allocation2 + $0xc] sm:$0x7]
        %vm832 = vsmask.f32 2304
        %vm833 = vsmask.f32 6416
        %vm834 = vmor %vm832, %vm833
        %v836 = vshrl.u32 %v828, 16
        %v838 = vrot.slane %v836, 5
        %v839 = vshll.u32 %v828, 16
        %v841 = vrot.slane %v839, 6
        %v842 = vor.u32 %v838, %v841
        %v843 = vrot.slane %v842, 4
        %v845 = vshrl.u32 %v829, 16
        %v847 = vrot.slane %v845, 5
        %v848 = vshll.u32 %v829, 16
        %v850 = vrot.slane %v848, 6
        %v851 = vor.u32 %v847, %v850
        %v852 = vsel %vm834, %v843, %v851
        %v853 = vrot.slane %v851, 4
        %v855 = vshrl.u32 %v830, 16
        %v857 = vrot.slane %v855, 5
        %v858 = vshll.u32 %v830, 16
        %v860 = vrot.slane %v858, 6
        %v861 = vor.u32 %v857, %v860
        %v862 = vsel %vm834, %v853, %v861
        %v863 = vrot.slane %v861, 4
        %v865 = vshrl.u32 %v831, 16
        %v867 = vrot.slane %v865, 5
        %v868 = vshll.u32 %v831, 16
        %v870 = vrot.slane %v868, 6
        %v871 = vor.u32 %v867, %v870
        %v872 = vsel %vm834, %v863, %v871
        %v873 = vrot.slane %v871, 4
        %878 = vst [vmem:[#allocation3 + $0xc] sm:$0xf] %v852
        %879 = vst [vmem:[#allocation3 + $0x28] sm:$0xf] %v862
        %880 = vst [vmem:[#allocation3 + $0x44] sm:$0xf] %v872
        %881 = vst [vmem:[#allocation3 + $0x60] sm:$0x1] %v873
        %v882 = vld [vmem:[#allocation2] sm:$0xc]
        %v883 = vld [vmem:[#allocation2 + $0x4] sm:$0xf]
        %v884 = vld [vmem:[#allocation2 + $0x8] sm:$0xf]
        %v885 = vld [vmem:[#allocation2 + $0xc] sm:$0x7]
        %vm890 = vcmask 1041408
        %vm891 = vcmask 1045508
        %vm892 = vmor %vm890, %vm891
        %v893 = vrot.slane %v882, 6
        %v894 = vrot.slane %v893, 4
        %v895 = vrot.slane %v883, 6
        %v896 = vsel %vm892, %v894, %v895
        %v897 = vrot.slane %v895, 4
        %v898 = vrot.slane %v884, 6
        %v899 = vsel %vm892, %v897, %v898
        %v900 = vrot.slane %v898, 4
        %v901 = vrot.slane %v885, 6
        %v902 = vsel %vm892, %v900, %v901
        %v903 = vrot.slane %v901, 4
        %908 = vst [vmem:[#allocation3 + $0x10] sm:$0xf] %v896
        %909 = vst [vmem:[#allocation3 + $0x2c] sm:$0xf] %v899
        %910 = vst [vmem:[#allocation3 + $0x48] sm:$0xf] %v902
        %911 = vst [vmem:[#allocation3 + $0x64] sm:$0x1] %v903
        %v912 = vld [vmem:[#allocation2] sm:$0xc]
        %v913 = vld [vmem:[#allocation2 + $0x4] sm:$0xf]
        %v914 = vld [vmem:[#allocation2 + $0x8] sm:$0xf]
        %v915 = vld [vmem:[#allocation2 + $0xc] sm:$0xf]
        %vm916 = vsmask.f32 1280
        %vm917 = vsmask.f32 5392
        %vm918 = vmor %vm916, %vm917
        %v920 = vshrl.u32 %v912, 16
        %v922 = vrot.slane %v920, 6
        %v923 = vshll.u32 %v912, 16
        %v925 = vrot.slane %v923, 7
        %v926 = vor.u32 %v922, %v925
        %v927 = vrot.slane %v926, 4
        %v929 = vshrl.u32 %v913, 16
        %v931 = vrot.slane %v929, 6
        %v932 = vshll.u32 %v913, 16
        %v934 = vrot.slane %v932, 7
        %v935 = vor.u32 %v931, %v934
        %v936 = vsel %vm918, %v927, %v935
        %v937 = vrot.slane %v935, 4
        %v939 = vshrl.u32 %v914, 16
        %v941 = vrot.slane %v939, 6
        %v942 = vshll.u32 %v914, 16
        %v944 = vrot.slane %v942, 7
        %v945 = vor.u32 %v941, %v944
        %v946 = vsel %vm918, %v937, %v945
        %v947 = vrot.slane %v945, 4
        %v949 = vshrl.u32 %v915, 16
        %v951 = vrot.slane %v949, 6
        %v952 = vshll.u32 %v915, 16
        %v954 = vrot.slane %v952, 7
        %v955 = vor.u32 %v951, %v954
        %v956 = vsel %vm918, %v947, %v955
        %v957 = vrot.slane %v955, 4
        %962 = vst [vmem:[#allocation3 + $0x14] sm:$0xf] %v936
        %963 = vst [vmem:[#allocation3 + $0x30] sm:$0xf] %v946
        %964 = vst [vmem:[#allocation3 + $0x4c] sm:$0xf] %v956
        %965 = vst [vmem:[#allocation3 + $0x68] sm:$0x1] %v957
        %v966 = vld [vmem:[#allocation2] sm:$0x8]
        %v967 = vld [vmem:[#allocation2 + $0x4] sm:$0xf]
        %v968 = vld [vmem:[#allocation2 + $0x8] sm:$0xf]
        %v969 = vld [vmem:[#allocation2 + $0xc] sm:$0xf]
        %vm974 = vcmask 1040384
        %vm975 = vcmask 1044484
        %vm976 = vmor %vm974, %vm975
        %v977 = vrot.slane %v966, 7
        %v978 = vrot.slane %v977, 4
        %v979 = vrot.slane %v967, 7
        %v980 = vsel %vm976, %v978, %v979
        %v981 = vrot.slane %v979, 4
        %v982 = vrot.slane %v968, 7
        %v983 = vsel %vm976, %v981, %v982
        %v984 = vrot.slane %v982, 4
        %v985 = vrot.slane %v969, 7
        %v986 = vsel %vm976, %v984, %v985
        %v987 = vrot.slane %v985, 4
        %992 = vst [vmem:[#allocation3 + $0x18] sm:$0xf] %v980
        %993 = vst [vmem:[#allocation3 + $0x34] sm:$0xf] %v983
        %994 = vst [vmem:[#allocation3 + $0x50] sm:$0xf] %v986
        %995 = vst [vmem:[#allocation3 + $0x6c] sm:$0x1] %v987
        %v996 = vld [vmem:[#allocation3] sm:$0xff]
        %v997 = vld [vmem:[#allocation3 + $0x8] sm:$0xff]
        %v998 = vld [vmem:[#allocation3 + $0x10] sm:$0xff]
        %v999 = vld [vmem:[#allocation3 + $0x18] sm:$0xf]
        %v1000 = vld [vmem:[#allocation3 + $0x1c] sm:$0xff]
        %v1001 = vld [vmem:[#allocation3 + $0x24] sm:$0xff]
        %v1002 = vld [vmem:[#allocation3 + $0x2c] sm:$0xff]
        %v1003 = vld [vmem:[#allocation3 + $0x34] sm:$0xf]
        %v1004 = vld [vmem:[#allocation3 + $0x38] sm:$0xff]
        %v1005 = vld [vmem:[#allocation3 + $0x40] sm:$0xff]
        %v1006 = vld [vmem:[#allocation3 + $0x48] sm:$0xff]
        %v1007 = vld [vmem:[#allocation3 + $0x50] sm:$0xf]
        %v1008 = vld [vmem:[#allocation3 + $0x54] sm:$0x11]
        %v1009 = vld [vmem:[#allocation3 + $0x5c] sm:$0x11]
        %v1010 = vld [vmem:[#allocation3 + $0x64] sm:$0x11]
        %v1011 = vld [vmem:[#allocation3 + $0x6c] sm:$0x1]
        %v1012 = vld [vmem:[#allocation10] sm:$0xf]
        %v1013 = vld [vmem:[#allocation10 + $0x4] sm:$0xf]
        %v1014 = vld [vmem:[#allocation10 + $0x8] sm:$0xf]
        %v1015 = vld [vmem:[#allocation10 + $0xc] sm:$0xf]
        %v1016 = vld [vmem:[#allocation10 + $0x10] sm:$0xf]
        %v1017 = vld [vmem:[#allocation10 + $0x14] sm:$0xf]
        %v1018 = vld [vmem:[#allocation10 + $0x18] sm:$0xf]
        %v1019 = vld [vmem:[#allocation10 + $0x1c] sm:$0xf]
        %v1020 = vld [vmem:[#allocation10 + $0x20] sm:$0xf]
        %v1021 = vld [vmem:[#allocation10 + $0x24] sm:$0xf]
        %v1022 = vld [vmem:[#allocation10 + $0x28] sm:$0xf]
        %v1023 = vld [vmem:[#allocation10 + $0x2c] sm:$0xf]
        %v1024 = vld [vmem:[#allocation10 + $0x30] sm:$0xf]
        %v1025 = vld [vmem:[#allocation10 + $0x34] sm:$0xf]
        %v1026 = vld [vmem:[#allocation10 + $0x38] sm:$0xf]
        %v1027 = vld [vmem:[#allocation10 + $0x3c] sm:$0xf]
        %v1028 = vld [vmem:[#allocation10 + $0x40] sm:$0xf]
        %v1029 = vld [vmem:[#allocation10 + $0x44] sm:$0xf]
        %v1030 = vld [vmem:[#allocation10 + $0x48] sm:$0xf]
        %v1031 = vld [vmem:[#allocation10 + $0x4c] sm:$0xf]
        %v1032 = vld [vmem:[#allocation10 + $0x50] sm:$0xf]
        %v1033 = vld [vmem:[#allocation10 + $0x54] sm:$0xf]
        %v1034 = vld [vmem:[#allocation10 + $0x58] sm:$0xf]
        %v1035 = vld [vmem:[#allocation10 + $0x5c] sm:$0xf]
        %v1036 = vld [vmem:[#allocation10 + $0x60] sm:$0xf]
        %v1037 = vld [vmem:[#allocation10 + $0x64] sm:$0xf]
        %v1038 = vld [vmem:[#allocation10 + $0x68] sm:$0xf]
        %v1039 = vld [vmem:[#allocation10 + $0x6c] sm:$0xf]
        %v1040 = vld [vmem:[#allocation10 + $0x70] sm:$0xf]
        %v1041 = vld [vmem:[#allocation10 + $0x74] sm:$0xf]
        %v1042 = vld [vmem:[#allocation10 + $0x78] sm:$0xf]
        %v1043 = vld [vmem:[#allocation10 + $0x7c] sm:$0xf]
        %v1044 = vld [vmem:[#allocation10 + $0x80] sm:$0xf]
        %v1045 = vld [vmem:[#allocation10 + $0x84] sm:$0xf]
        %v1046 = vld [vmem:[#allocation10 + $0x88] sm:$0xf]
        %v1047 = vld [vmem:[#allocation10 + $0x8c] sm:$0xf]
        %v1048 = vld [vmem:[#allocation10 + $0x90] sm:$0xf]
        %v1049 = vld [vmem:[#allocation10 + $0x94] sm:$0xf]
        %v1050 = vld [vmem:[#allocation10 + $0x98] sm:$0xf]
        %v1051 = vld [vmem:[#allocation10 + $0x9c] sm:$0xf]
        %v1052 = vld [vmem:[#allocation10 + $0xa0] sm:$0xf]
        %v1053 = vld [vmem:[#allocation10 + $0xa4] sm:$0xf]
        %v1054 = vld [vmem:[#allocation10 + $0xa8] sm:$0xf]
        %v1055 = vld [vmem:[#allocation10 + $0xac] sm:$0xf]
        %v1056 = vld [vmem:[#allocation10 + $0xb0] sm:$0xf]
        %v1057 = vld [vmem:[#allocation10 + $0xb4] sm:$0xf]
        %v1058 = vld [vmem:[#allocation10 + $0xb8] sm:$0xf]
        %v1059 = vld [vmem:[#allocation10 + $0xbc] sm:$0xf]
        %v1060 = vld [vmem:[#allocation10 + $0xc0] sm:$0xf]
        %v1061 = vld [vmem:[#allocation10 + $0xc4] sm:$0xf]
        %v1062 = vld [vmem:[#allocation10 + $0xc8] sm:$0xf]
        %v1063 = vld [vmem:[#allocation10 + $0xcc] sm:$0xf]
        %v1064 = vld [vmem:[#allocation10 + $0xd0] sm:$0xf]
        %v1065 = vld [vmem:[#allocation10 + $0xd4] sm:$0xf]
        %v1066 = vld [vmem:[#allocation10 + $0xd8] sm:$0xf]
        %v1067 = vld [vmem:[#allocation10 + $0xdc] sm:$0xf]
        %v1068 = vld [vmem:[#allocation10 + $0xe0] sm:$0xf]
        %v1069 = vld [vmem:[#allocation10 + $0xe4] sm:$0xf]
        %v1070 = vld [vmem:[#allocation10 + $0xe8] sm:$0xf]
        %v1071 = vld [vmem:[#allocation10 + $0xec] sm:$0xf]
        %v1072 = vld [vmem:[#allocation10 + $0xf0] sm:$0xf]
        %v1073 = vld [vmem:[#allocation10 + $0xf4] sm:$0xf]
        %v1074 = vld [vmem:[#allocation10 + $0xf8] sm:$0xf]
        %v1075 = vld [vmem:[#allocation10 + $0xfc] sm:$0xf]
        %v1076 = vld [vmem:[#allocation10 + $0x100] sm:$0xf]
        %v1077 = vld [vmem:[#allocation10 + $0x104] sm:$0xf]
        %v1078 = vld [vmem:[#allocation10 + $0x108] sm:$0xf]
        %v1079 = vld [vmem:[#allocation10 + $0x10c] sm:$0xf]
        %v1080 = vld [vmem:[#allocation10 + $0x110] sm:$0xf]
        %v1081 = vld [vmem:[#allocation10 + $0x114] sm:$0xf]
        %v1082 = vld [vmem:[#allocation10 + $0x118] sm:$0xf]
        %v1083 = vld [vmem:[#allocation10 + $0x11c] sm:$0xf]
        %v1084 = vld [vmem:[#allocation10 + $0x120] sm:$0xf]
        %v1085 = vld [vmem:[#allocation10 + $0x124] sm:$0xf]
        %v1086 = vld [vmem:[#allocation10 + $0x128] sm:$0xf]
        %v1087 = vld [vmem:[#allocation10 + $0x12c] sm:$0xf]
        %v1088 = vld [vmem:[#allocation10 + $0x130] sm:$0xf]
        %v1089 = vld [vmem:[#allocation10 + $0x134] sm:$0xf]
        %v1090 = vld [vmem:[#allocation10 + $0x138] sm:$0xf]
        %v1091 = vld [vmem:[#allocation10 + $0x13c] sm:$0xf]
        %v1092 = vld [vmem:[#allocation10 + $0x140] sm:$0xf]
        %v1093 = vld [vmem:[#allocation10 + $0x144] sm:$0xf]
        %v1094 = vld [vmem:[#allocation10 + $0x148] sm:$0xf]
        %v1095 = vld [vmem:[#allocation10 + $0x14c] sm:$0xf]
        %v1096 = vld [vmem:[#allocation10 + $0x150] sm:$0xf]
        %v1097 = vld [vmem:[#allocation10 + $0x154] sm:$0xf]
        %v1098 = vld [vmem:[#allocation10 + $0x158] sm:$0xf]
        %v1099 = vld [vmem:[#allocation10 + $0x15c] sm:$0xf]
        %v1100 = vld [vmem:[#allocation10 + $0x160] sm:$0xf]
        %v1101 = vld [vmem:[#allocation10 + $0x164] sm:$0xf]
        %v1102 = vld [vmem:[#allocation10 + $0x168] sm:$0xf]
        %v1103 = vld [vmem:[#allocation10 + $0x16c] sm:$0xf]
        %v1104 = vld [vmem:[#allocation10 + $0x170] sm:$0xf]
        %v1105 = vld [vmem:[#allocation10 + $0x174] sm:$0xf]
        %v1106 = vld [vmem:[#allocation10 + $0x178] sm:$0xf]
        %v1107 = vld [vmem:[#allocation10 + $0x17c] sm:$0xf]
        %v1108 = vld [vmem:[#allocation10 + $0x180] sm:$0xf]
        %v1109 = vld [vmem:[#allocation10 + $0x184] sm:$0xf]
        %v1110 = vld [vmem:[#allocation10 + $0x188] sm:$0xf]
        %v1111 = vld [vmem:[#allocation10 + $0x18c] sm:$0xf]
        %v1112 = vld [vmem:[#allocation10 + $0x190] sm:$0xf]
        %v1113 = vld [vmem:[#allocation10 + $0x194] sm:$0xf]
        %v1114 = vld [vmem:[#allocation10 + $0x198] sm:$0xf]
        %v1115 = vld [vmem:[#allocation10 + $0x19c] sm:$0xf]
        %v1116 = vld [vmem:[#allocation10 + $0x1a0] sm:$0xf]
        %v1117 = vld [vmem:[#allocation10 + $0x1a4] sm:$0xf]
        %v1118 = vld [vmem:[#allocation10 + $0x1a8] sm:$0xf]
        %v1119 = vld [vmem:[#allocation10 + $0x1ac] sm:$0xf]
        %v1120 = vld [vmem:[#allocation10 + $0x1b0] sm:$0xf]
        %v1121 = vld [vmem:[#allocation10 + $0x1b4] sm:$0xf]
        %v1122 = vld [vmem:[#allocation10 + $0x1b8] sm:$0xf]
        %v1123 = vld [vmem:[#allocation10 + $0x1bc] sm:$0xf]
        %v1140 = vunpack.c.l.b16 %v996
        %v1141 = vunpack.c.h.b16 %v996
        %v1142 = vunpack.c.l.b16 %v997
        %v1143 = vunpack.c.h.b16 %v997
        %v1144 = vunpack.c.l.b16 %v998
        %v1145 = vunpack.c.h.b16 %v998
        %v1146 = vunpack.c.l.b16 %v999
        %v1147 = vunpack.c.l.b16 %v1000
        %v1148 = vunpack.c.h.b16 %v1000
        %v1149 = vunpack.c.l.b16 %v1001
        %v1150 = vunpack.c.h.b16 %v1001
        %v1151 = vunpack.c.l.b16 %v1002
        %v1152 = vunpack.c.h.b16 %v1002
        %v1153 = vunpack.c.l.b16 %v1003
        %v1154 = vunpack.c.l.b16 %v1004
        %v1155 = vunpack.c.h.b16 %v1004
        %v1156 = vunpack.c.l.b16 %v1005
        %v1157 = vunpack.c.h.b16 %v1005
        %v1158 = vunpack.c.l.b16 %v1006
        %v1159 = vunpack.c.h.b16 %v1006
        %v1160 = vunpack.c.l.b16 %v1007
        %v1161 = vunpack.c.l.b16 %v1008
        %v1162 = vunpack.c.h.b16 %v1008
        %v1163 = vunpack.c.l.b16 %v1009
        %v1164 = vunpack.c.h.b16 %v1009
        %v1165 = vunpack.c.l.b16 %v1010
        %v1166 = vunpack.c.h.b16 %v1010
        %v1167 = vunpack.c.l.b16 %v1011
        %v1168 = vpack.c.b16 %v1147, %v1140
        %v1169 = vpack.c.b16 %v1148, %v1141
        %v1170 = vpack.c.b16 %v1149, %v1142
        %v1171 = vpack.c.b16 %v1150, %v1143
        %v1172 = vpack.c.b16 %v1151, %v1144
        %v1173 = vpack.c.b16 %v1152, %v1145
        %v1174 = vpack.c.b16 %v1153, %v1146
        %v1175 = vpack.c.b16 %v1161, %v1154
        %v1176 = vpack.c.b16 %v1162, %v1155
        %v1177 = vpack.c.b16 %v1163, %v1156
        %v1178 = vpack.c.b16 %v1164, %v1157
        %v1179 = vpack.c.b16 %v1165, %v1158
        %v1180 = vpack.c.b16 %v1166, %v1159
        %v1181 = vpack.c.b16 %v1167, %v1160
        %v1308 = vunpack.c.l.b16 %v1012
        %v1309 = vunpack.c.l.b16 %v1013
        %v1310 = vunpack.c.l.b16 %v1014
        %v1311 = vunpack.c.l.b16 %v1015
        %v1312 = vunpack.c.l.b16 %v1016
        %v1313 = vunpack.c.l.b16 %v1017
        %v1314 = vunpack.c.l.b16 %v1018
        %v1315 = vunpack.c.l.b16 %v1019
        %v1316 = vunpack.c.l.b16 %v1020
        %v1317 = vunpack.c.l.b16 %v1021
        %v1318 = vunpack.c.l.b16 %v1022
        %v1319 = vunpack.c.l.b16 %v1023
        %v1320 = vunpack.c.l.b16 %v1024
        %v1321 = vunpack.c.l.b16 %v1025
        %v1322 = vunpack.c.l.b16 %v1026
        %v1323 = vunpack.c.l.b16 %v1027
        %v1324 = vunpack.c.l.b16 %v1028
        %v1325 = vunpack.c.l.b16 %v1029
        %v1326 = vunpack.c.l.b16 %v1030
        %v1327 = vunpack.c.l.b16 %v1031
        %v1328 = vunpack.c.l.b16 %v1032
        %v1329 = vunpack.c.l.b16 %v1033
        %v1330 = vunpack.c.l.b16 %v1034
        %v1331 = vunpack.c.l.b16 %v1035
        %v1332 = vunpack.c.l.b16 %v1036
        %v1333 = vunpack.c.l.b16 %v1037
        %v1334 = vunpack.c.l.b16 %v1038
        %v1335 = vunpack.c.l.b16 %v1039
        %v1336 = vunpack.c.l.b16 %v1040
        %v1337 = vunpack.c.l.b16 %v1041
        %v1338 = vunpack.c.l.b16 %v1042
        %v1339 = vunpack.c.l.b16 %v1043
        %v1340 = vunpack.c.l.b16 %v1044
        %v1341 = vunpack.c.l.b16 %v1045
        %v1342 = vunpack.c.l.b16 %v1046
        %v1343 = vunpack.c.l.b16 %v1047
        %v1344 = vunpack.c.l.b16 %v1048
        %v1345 = vunpack.c.l.b16 %v1049
        %v1346 = vunpack.c.l.b16 %v1050
        %v1347 = vunpack.c.l.b16 %v1051
        %v1348 = vunpack.c.l.b16 %v1052
        %v1349 = vunpack.c.l.b16 %v1053
        %v1350 = vunpack.c.l.b16 %v1054
        %v1351 = vunpack.c.l.b16 %v1055
        %v1352 = vunpack.c.l.b16 %v1056
        %v1353 = vunpack.c.l.b16 %v1057
        %v1354 = vunpack.c.l.b16 %v1058
        %v1355 = vunpack.c.l.b16 %v1059
        %v1356 = vunpack.c.l.b16 %v1060
        %v1357 = vunpack.c.l.b16 %v1061
        %v1358 = vunpack.c.l.b16 %v1062
        %v1359 = vunpack.c.l.b16 %v1063
        %v1360 = vunpack.c.l.b16 %v1064
        %v1361 = vunpack.c.l.b16 %v1065
        %v1362 = vunpack.c.l.b16 %v1066
        %v1363 = vunpack.c.l.b16 %v1067
        %v1364 = vunpack.c.l.b16 %v1068
        %v1365 = vunpack.c.l.b16 %v1069
        %v1366 = vunpack.c.l.b16 %v1070
        %v1367 = vunpack.c.l.b16 %v1071
        %v1368 = vunpack.c.l.b16 %v1072
        %v1369 = vunpack.c.l.b16 %v1073
        %v1370 = vunpack.c.l.b16 %v1074
        %v1371 = vunpack.c.l.b16 %v1075
        %v1372 = vunpack.c.l.b16 %v1076
        %v1373 = vunpack.c.l.b16 %v1077
        %v1374 = vunpack.c.l.b16 %v1078
        %v1375 = vunpack.c.l.b16 %v1079
        %v1376 = vunpack.c.l.b16 %v1080
        %v1377 = vunpack.c.l.b16 %v1081
        %v1378 = vunpack.c.l.b16 %v1082
        %v1379 = vunpack.c.l.b16 %v1083
        %v1380 = vunpack.c.l.b16 %v1084
        %v1381 = vunpack.c.l.b16 %v1085
        %v1382 = vunpack.c.l.b16 %v1086
        %v1383 = vunpack.c.l.b16 %v1087
        %v1384 = vunpack.c.l.b16 %v1088
        %v1385 = vunpack.c.l.b16 %v1089
        %v1386 = vunpack.c.l.b16 %v1090
        %v1387 = vunpack.c.l.b16 %v1091
        %v1388 = vunpack.c.l.b16 %v1092
        %v1389 = vunpack.c.l.b16 %v1093
        %v1390 = vunpack.c.l.b16 %v1094
        %v1391 = vunpack.c.l.b16 %v1095
        %v1392 = vunpack.c.l.b16 %v1096
        %v1393 = vunpack.c.l.b16 %v1097
        %v1394 = vunpack.c.l.b16 %v1098
        %v1395 = vunpack.c.l.b16 %v1099
        %v1396 = vunpack.c.l.b16 %v1100
        %v1397 = vunpack.c.l.b16 %v1101
        %v1398 = vunpack.c.l.b16 %v1102
        %v1399 = vunpack.c.l.b16 %v1103
        %v1400 = vunpack.c.l.b16 %v1104
        %v1401 = vunpack.c.l.b16 %v1105
        %v1402 = vunpack.c.l.b16 %v1106
        %v1403 = vunpack.c.l.b16 %v1107
        %v1404 = vunpack.c.l.b16 %v1108
        %v1405 = vunpack.c.l.b16 %v1109
        %v1406 = vunpack.c.l.b16 %v1110
        %v1407 = vunpack.c.l.b16 %v1111
        %v1408 = vunpack.c.l.b16 %v1112
        %v1409 = vunpack.c.l.b16 %v1113
        %v1410 = vunpack.c.l.b16 %v1114
        %v1411 = vunpack.c.l.b16 %v1115
        %v1412 = vunpack.c.l.b16 %v1116
        %v1413 = vunpack.c.l.b16 %v1117
        %v1414 = vunpack.c.l.b16 %v1118
        %v1415 = vunpack.c.l.b16 %v1119
        %v1416 = vunpack.c.l.b16 %v1120
        %v1417 = vunpack.c.l.b16 %v1121
        %v1418 = vunpack.c.l.b16 %v1122
        %v1419 = vunpack.c.l.b16 %v1123
        %v1420 = vpack.c.b16 %v1309, %v1308
        %v1421 = vpack.c.b16 %v1311, %v1310
        %v1422 = vpack.c.b16 %v1313, %v1312
        %v1423 = vpack.c.b16 %v1315, %v1314
        %v1424 = vpack.c.b16 %v1317, %v1316
        %v1425 = vpack.c.b16 %v1319, %v1318
        %v1426 = vpack.c.b16 %v1321, %v1320
        %v1427 = vpack.c.b16 %v1323, %v1322
        %v1428 = vpack.c.b16 %v1325, %v1324
        %v1429 = vpack.c.b16 %v1327, %v1326
        %v1430 = vpack.c.b16 %v1329, %v1328
        %v1431 = vpack.c.b16 %v1331, %v1330
        %v1432 = vpack.c.b16 %v1333, %v1332
        %v1433 = vpack.c.b16 %v1335, %v1334
        %v1434 = vpack.c.b16 %v1337, %v1336
        %v1435 = vpack.c.b16 %v1339, %v1338
        %v1436 = vpack.c.b16 %v1341, %v1340
        %v1437 = vpack.c.b16 %v1343, %v1342
        %v1438 = vpack.c.b16 %v1345, %v1344
        %v1439 = vpack.c.b16 %v1347, %v1346
        %v1440 = vpack.c.b16 %v1349, %v1348
        %v1441 = vpack.c.b16 %v1351, %v1350
        %v1442 = vpack.c.b16 %v1353, %v1352
        %v1443 = vpack.c.b16 %v1355, %v1354
        %v1444 = vpack.c.b16 %v1357, %v1356
        %v1445 = vpack.c.b16 %v1359, %v1358
        %v1446 = vpack.c.b16 %v1361, %v1360
        %v1447 = vpack.c.b16 %v1363, %v1362
        %v1448 = vpack.c.b16 %v1365, %v1364
        %v1449 = vpack.c.b16 %v1367, %v1366
        %v1450 = vpack.c.b16 %v1369, %v1368
        %v1451 = vpack.c.b16 %v1371, %v1370
        %v1452 = vpack.c.b16 %v1373, %v1372
        %v1453 = vpack.c.b16 %v1375, %v1374
        %v1454 = vpack.c.b16 %v1377, %v1376
        %v1455 = vpack.c.b16 %v1379, %v1378
        %v1456 = vpack.c.b16 %v1381, %v1380
        %v1457 = vpack.c.b16 %v1383, %v1382
        %v1458 = vpack.c.b16 %v1385, %v1384
        %v1459 = vpack.c.b16 %v1387, %v1386
        %v1460 = vpack.c.b16 %v1389, %v1388
        %v1461 = vpack.c.b16 %v1391, %v1390
        %v1462 = vpack.c.b16 %v1393, %v1392
        %v1463 = vpack.c.b16 %v1395, %v1394
        %v1464 = vpack.c.b16 %v1397, %v1396
        %v1465 = vpack.c.b16 %v1399, %v1398
        %v1466 = vpack.c.b16 %v1401, %v1400
        %v1467 = vpack.c.b16 %v1403, %v1402
        %v1468 = vpack.c.b16 %v1405, %v1404
        %v1469 = vpack.c.b16 %v1407, %v1406
        %v1470 = vpack.c.b16 %v1409, %v1408
        %v1471 = vpack.c.b16 %v1411, %v1410
        %v1472 = vpack.c.b16 %v1413, %v1412
        %v1473 = vpack.c.b16 %v1415, %v1414
        %v1474 = vpack.c.b16 %v1417, %v1416
        %v1475 = vpack.c.b16 %v1419, %v1418
        %1532 = vmatpush.bf16.msra.mxu0 %v1427
        %1533 = vmatpush.bf16.msra.mxu0 %v1426
        %1534 = vmatpush.bf16.msra.mxu0 %v1425
        %1535 = vmatpush.bf16.msra.mxu0 %v1424
        %1536 = vmatpush.bf16.msra.mxu0 %v1423
        %1537 = vmatpush.bf16.msra.mxu0 %v1422
        %1538 = vmatpush.bf16.msra.mxu0 %v1421
        %1539 = vmatpush.bf16.msra.mxu0 %v1420
        %1540 = vmatmul.bf16.gmra.mxu0 %v1168
        %v1541 = vpop.f32.mrf.mxu0
        %v1542 = vadd.f32 0.0, %v1541
        %v1543 = vpop.f32.mrf.mxu0
        %v1544 = vadd.f32 0.0, %v1543
        %1545 = vmatmul.bf16.gmra.mxu0 %v1175
        %v1546 = vpop.f32.mrf.mxu0
        %v1547 = vadd.f32 0.0, %v1546
        %v1548 = vpop.f32.mrf.mxu0
        %v1549 = vadd.f32 0.0, %v1548
        %1550 = vdwg.mxu0
        %1551 = vmatpush.bf16.msra.mxu0 %v1435
        %1552 = vmatpush.bf16.msra.mxu0 %v1434
        %1553 = vmatpush.bf16.msra.mxu0 %v1433
        %1554 = vmatpush.bf16.msra.mxu0 %v1432
        %1555 = vmatpush.bf16.msra.mxu0 %v1431
        %1556 = vmatpush.bf16.msra.mxu0 %v1430
        %1557 = vmatpush.bf16.msra.mxu0 %v1429
        %1558 = vmatpush.bf16.msra.mxu0 %v1428
        %1559 = vmatmul.bf16.gmra.mxu0 %v1169
        %v1560 = vpop.f32.mrf.mxu0
        %v1561 = vadd.f32 %v1542, %v1560
        %v1562 = vpop.f32.mrf.mxu0
        %v1563 = vadd.f32 %v1544, %v1562
        %1564 = vmatmul.bf16.gmra.mxu0 %v1176
        %v1565 = vpop.f32.mrf.mxu0
        %v1566 = vadd.f32 %v1547, %v1565
        %v1567 = vpop.f32.mrf.mxu0
        %v1568 = vadd.f32 %v1549, %v1567
        %1569 = vdwg.mxu0
        %1570 = vmatpush.bf16.msra.mxu0 %v1443
        %1571 = vmatpush.bf16.msra.mxu0 %v1442
        %1572 = vmatpush.bf16.msra.mxu0 %v1441
        %1573 = vmatpush.bf16.msra.mxu0 %v1440
        %1574 = vmatpush.bf16.msra.mxu0 %v1439
        %1575 = vmatpush.bf16.msra.mxu0 %v1438
        %1576 = vmatpush.bf16.msra.mxu0 %v1437
        %1577 = vmatpush.bf16.msra.mxu0 %v1436
        %1578 = vmatmul.bf16.gmra.mxu0 %v1170
        %v1579 = vpop.f32.mrf.mxu0
        %v1580 = vadd.f32 %v1561, %v1579
        %v1581 = vpop.f32.mrf.mxu0
        %v1582 = vadd.f32 %v1563, %v1581
        %1583 = vmatmul.bf16.gmra.mxu0 %v1177
        %v1584 = vpop.f32.mrf.mxu0
        %v1585 = vadd.f32 %v1566, %v1584
        %v1586 = vpop.f32.mrf.mxu0
        %v1587 = vadd.f32 %v1568, %v1586
        %1588 = vdwg.mxu0
        %1589 = vmatpush.bf16.msra.mxu0 %v1451
        %1590 = vmatpush.bf16.msra.mxu0 %v1450
        %1591 = vmatpush.bf16.msra.mxu0 %v1449
        %1592 = vmatpush.bf16.msra.mxu0 %v1448
        %1593 = vmatpush.bf16.msra.mxu0 %v1447
        %1594 = vmatpush.bf16.msra.mxu0 %v1446
        %1595 = vmatpush.bf16.msra.mxu0 %v1445
        %1596 = vmatpush.bf16.msra.mxu0 %v1444
        %1597 = vmatmul.bf16.gmra.mxu0 %v1171
        %v1598 = vpop.f32.mrf.mxu0
        %v1599 = vadd.f32 %v1580, %v1598
        %v1600 = vpop.f32.mrf.mxu0
        %v1601 = vadd.f32 %v1582, %v1600
        %1602 = vmatmul.bf16.gmra.mxu0 %v1178
        %v1603 = vpop.f32.mrf.mxu0
        %v1604 = vadd.f32 %v1585, %v1603
        %v1605 = vpop.f32.mrf.mxu0
        %v1606 = vadd.f32 %v1587, %v1605
        %1607 = vdwg.mxu0
        %1608 = vmatpush.bf16.msra.mxu0 %v1459
        %1609 = vmatpush.bf16.msra.mxu0 %v1458
        %1610 = vmatpush.bf16.msra.mxu0 %v1457
        %1611 = vmatpush.bf16.msra.mxu0 %v1456
        %1612 = vmatpush.bf16.msra.mxu0 %v1455
        %1613 = vmatpush.bf16.msra.mxu0 %v1454
        %1614 = vmatpush.bf16.msra.mxu0 %v1453
        %1615 = vmatpush.bf16.msra.mxu0 %v1452
        %1616 = vmatmul.bf16.gmra.mxu0 %v1172
        %v1617 = vpop.f32.mrf.mxu0
        %v1618 = vadd.f32 %v1599, %v1617
        %v1619 = vpop.f32.mrf.mxu0
        %v1620 = vadd.f32 %v1601, %v1619
        %1621 = vmatmul.bf16.gmra.mxu0 %v1179
        %v1622 = vpop.f32.mrf.mxu0
        %v1623 = vadd.f32 %v1604, %v1622
        %v1624 = vpop.f32.mrf.mxu0
        %v1625 = vadd.f32 %v1606, %v1624
        %1626 = vdwg.mxu0
        %1627 = vmatpush.bf16.msra.mxu0 %v1467
        %1628 = vmatpush.bf16.msra.mxu0 %v1466
        %1629 = vmatpush.bf16.msra.mxu0 %v1465
        %1630 = vmatpush.bf16.msra.mxu0 %v1464
        %1631 = vmatpush.bf16.msra.mxu0 %v1463
        %1632 = vmatpush.bf16.msra.mxu0 %v1462
        %1633 = vmatpush.bf16.msra.mxu0 %v1461
        %1634 = vmatpush.bf16.msra.mxu0 %v1460
        %1635 = vmatmul.bf16.gmra.mxu0 %v1173
        %v1636 = vpop.f32.mrf.mxu0
        %v1637 = vadd.f32 %v1618, %v1636
        %v1638 = vpop.f32.mrf.mxu0
        %v1639 = vadd.f32 %v1620, %v1638
        %1640 = vmatmul.bf16.gmra.mxu0 %v1180
        %v1641 = vpop.f32.mrf.mxu0
        %v1642 = vadd.f32 %v1623, %v1641
        %v1643 = vpop.f32.mrf.mxu0
        %v1644 = vadd.f32 %v1625, %v1643
        %1645 = vdwg.mxu0
        %1646 = vmatpush.bf16.msra.mxu0 %v1475
        %1647 = vmatpush.bf16.msra.mxu0 %v1474
        %1648 = vmatpush.bf16.msra.mxu0 %v1473
        %1649 = vmatpush.bf16.msra.mxu0 %v1472
        %1650 = vmatpush.bf16.msra.mxu0 %v1471
        %1651 = vmatpush.bf16.msra.mxu0 %v1470
        %1652 = vmatpush.bf16.msra.mxu0 %v1469
        %1653 = vmatpush.bf16.msra.mxu0 %v1468
        %1654 = vmatmul.bf16.gmra.mxu0 %v1174
        %v1655 = vpop.f32.mrf.mxu0
        %v1656 = vadd.f32 %v1637, %v1655
        %v1657 = vpop.f32.mrf.mxu0
        %v1658 = vadd.f32 %v1639, %v1657
        %1659 = vmatmul.bf16.gmra.mxu0 %v1181
        %v1660 = vpop.f32.mrf.mxu0
        %v1661 = vadd.f32 %v1642, %v1660
        %v1662 = vpop.f32.mrf.mxu0
        %v1663 = vadd.f32 %v1644, %v1662
        %1664 = vdwg.mxu0
        %v1665 = vld [vmem:[%s4] sm:$0x1]
        %v1667 = vperm.slane %v1665, 0
        %v1669 = vmul.f32 %v1656, %v1667
        %v1670 = vmul.f32 %v1658, %v1667
        %v1671 = vmul.f32 %v1661, %v1667
        %v1672 = vmul.f32 %v1663, %v1667
        %v1673 = vld [vmem:[%s5] sm:$0x1]
        %v1675 = vperm.slane %v1673, 0
        %v1677 = vadd.f32 %v1669, %v1675
        %v1678 = vadd.f32 %v1670, %v1675
        %v1679 = vadd.f32 %v1671, %v1675
        %v1680 = vadd.f32 %v1672, %v1675
        %v1681 = vmax.f32 %v1677, 0.0
        %v1682 = vmax.f32 %v1678, 0.0
        %v1683 = vmax.f32 %v1679, 0.0
        %v1684 = vmax.f32 %v1680, 0.0
        %s1685 = sadd.s32 %s717, 4294967291
        %v1686 = vlaneseq
        %v1687 = vshrl.u32 %v1686, 7
        %v1688 = vadd.s32 %v1687, 8
        %v1689 = vadd.s32 %v1687, 16
        %v1690 = vadd.s32 %v1687, 24
        %v1691 = vstv %s1685
        %v1692 = vadd.s32 %v1691, %v1687
        %v1693 = vadd.s32 %v1691, %v1688
        %v1694 = vadd.s32 %v1691, %v1689
        %v1695 = vadd.s32 %v1691, %v1690
        %vm1696 = vcmp.ge.s32.totalorder %v1692, 0
        %vm1697 = vcmp.ge.s32.totalorder %v1693, 0
        %vm1698 = vcmp.ge.s32.totalorder %v1694, 0
        %vm1699 = vcmp.ge.s32.totalorder %v1695, 0
        %vm1700 = vcmp.lt.s32.totalorder %v1692, 40
        %vm1701 = vcmp.lt.s32.totalorder %v1693, 40
        %vm1702 = vcmp.lt.s32.totalorder %v1694, 40
        %vm1703 = vcmp.lt.s32.totalorder %v1695, 40
        %vm1704 = vmand %vm1696, %vm1700
        %vm1705 = vmand %vm1697, %vm1701
        %vm1706 = vmand %vm1698, %vm1702
        %vm1707 = vmand %vm1699, %vm1703
        %v1708 = vsel %vm1704, 1, 0
        %v1709 = vsel %vm1705, 1, 0
        %v1710 = vsel %vm1706, 1, 0
        %v1711 = vsel %vm1707, 1, 0
        %vm1712 = vcmp.eq.s32.totalorder %v1708, 1
        %vm1713 = vcmp.eq.s32.totalorder %v1709, 1
        %vm1714 = vcmp.eq.s32.totalorder %v1710, 1
        %vm1715 = vcmp.eq.s32.totalorder %v1711, 1
        %v1716 = vsel %vm1712, %v1681, 0.0
        %v1717 = vsel %vm1713, %v1682, 0.0
        %v1718 = vsel %vm1714, %v1683, 0.0
        %v1719 = vsel %vm1715, %v1684, 0.0
        %v1720 = vpack.c.bf16 %v1716, %v1716
        %v1721 = vpack.c.bf16 %v1717, %v1717
        %v1722 = vpack.c.bf16 %v1718, %v1718
        %v1723 = vpack.c.bf16 %v1719, %v1719
        %1724 = vst [vmem:[#allocation3] sm:$0xf] %v1720
        %1725 = vst [vmem:[#allocation3 + $0x1c] sm:$0xf] %v1721
        %1726 = vst [vmem:[#allocation3 + $0x38] sm:$0x7] %v1722
        %v1728 = vshrl.u32 %v1720, 16
        %v1730 = vrot.slane %v1728, 4
        %v1731 = vshll.u32 %v1720, 16
        %v1733 = vrot.slane %v1731, 5
        %v1734 = vor.u32 %v1730, %v1733
        %v1735 = vrot.slane %v1734, 4
        %v1737 = vshll.u32 %v1721, 16
        %v1739 = vrot.slane %v1737, 5
        %v1740 = vsel %vm750, %v1735, %v1739
        %v1741 = vshrl.u32 %v1721, 16
        %v1743 = vrot.slane %v1741, 4
        %v1744 = vor.u32 %v1743, %v1739
        %v1745 = vrot.slane %v1744, 4
        %v1747 = vshll.u32 %v1722, 16
        %v1749 = vrot.slane %v1747, 5
        %v1750 = vsel %vm750, %v1745, %v1749
        %v1751 = vshrl.u32 %v1722, 16
        %v1753 = vrot.slane %v1751, 4
        %v1754 = vor.u32 %v1753, %v1749
        %v1755 = vrot.slane %v1754, 4
        %1759 = vst [vmem:[#allocation3 + $0x4] sm:$0xf] %v1740
        %1760 = vst [vmem:[#allocation3 + $0x20] sm:$0xf] %v1750
        %1761 = vst [vmem:[#allocation3 + $0x3c] sm:$0x7] %v1755
        %v1765 = vrot.slane %v1720, 5
        %v1766 = vrot.slane %v1765, 4
        %v1767 = vrot.slane %v1721, 5
        %v1768 = vsel %vm808, %v1766, %v1767
        %v1769 = vrot.slane %v1767, 4
        %v1770 = vrot.slane %v1722, 5
        %v1771 = vsel %vm808, %v1769, %v1770
        %v1772 = vrot.slane %v1770, 4
        %1776 = vst [vmem:[#allocation3 + $0x8] sm:$0xf] %v1768
        %1777 = vst [vmem:[#allocation3 + $0x24] sm:$0xf] %v1771
        %1778 = vst [vmem:[#allocation3 + $0x40] sm:$0x7] %v1772
        %v1779 = vrot.slane %v1728, 5
        %v1780 = vrot.slane %v1731, 6
        %v1781 = vor.u32 %v1779, %v1780
        %v1782 = vrot.slane %v1781, 4
        %v1783 = vrot.slane %v1741, 5
        %v1784 = vrot.slane %v1737, 6
        %v1785 = vor.u32 %v1783, %v1784
        %v1786 = vsel %vm834, %v1782, %v1785
        %v1787 = vrot.slane %v1785, 4
        %v1788 = vrot.slane %v1751, 5
        %v1789 = vrot.slane %v1747, 6
        %v1790 = vor.u32 %v1788, %v1789
        %v1791 = vsel %vm834, %v1787, %v1790
        %v1792 = vrot.slane %v1790, 4
        %v1794 = vshll.u32 %v1723, 16
        %v1796 = vrot.slane %v1794, 6
        %v1797 = vsel %vm834, %v1792, %v1796
        %1801 = vst [vmem:[#allocation3 + $0xc] sm:$0xf] %v1786
        %1802 = vst [vmem:[#allocation3 + $0x28] sm:$0xf] %v1791
        %1803 = vst [vmem:[#allocation3 + $0x44] sm:$0x7] %v1797
        %v1805 = vrot.slane %v1720, 6
        %v1806 = vrot.slane %v1805, 4
        %v1807 = vrot.slane %v1721, 6
        %v1808 = vsel %vm892, %v1806, %v1807
        %v1809 = vrot.slane %v1807, 4
        %v1810 = vrot.slane %v1722, 6
        %v1811 = vsel %vm892, %v1809, %v1810
        %v1812 = vrot.slane %v1810, 4
        %v1813 = vrot.slane %v1723, 6
        %v1814 = vsel %vm892, %v1812, %v1813
        %1818 = vst [vmem:[#allocation3 + $0x10] sm:$0xf] %v1808
        %1819 = vst [vmem:[#allocation3 + $0x2c] sm:$0xf] %v1811
        %1820 = vst [vmem:[#allocation3 + $0x48] sm:$0x7] %v1814
        %v1821 = vld [vmem:[#allocation3] sm:$0xff]
        %v1822 = vld [vmem:[#allocation3 + $0x8] sm:$0xff]
        %v1823 = vld [vmem:[#allocation3 + $0x10] sm:$0xf]
        %v1824 = vld [vmem:[#allocation3 + $0x1c] sm:$0xff]
        %v1825 = vld [vmem:[#allocation3 + $0x24] sm:$0xff]
        %v1826 = vld [vmem:[#allocation3 + $0x2c] sm:$0xf]
        %v1827 = vld [vmem:[#allocation3 + $0x38] sm:$0x77]
        %v1828 = vld [vmem:[#allocation3 + $0x40] sm:$0x77]
        %v1829 = vld [vmem:[#allocation3 + $0x48] sm:$0x7]
        %v1830 = vld [vmem:[#allocation12] sm:$0xf]
        %v1831 = vld [vmem:[#allocation12 + $0x4] sm:$0xf]
        %v1832 = vld [vmem:[#allocation12 + $0x8] sm:$0xf]
        %v1833 = vld [vmem:[#allocation12 + $0xc] sm:$0xf]
        %v1834 = vld [vmem:[#allocation12 + $0x10] sm:$0xf]
        %v1835 = vld [vmem:[#allocation12 + $0x14] sm:$0xf]
        %v1836 = vld [vmem:[#allocation12 + $0x18] sm:$0xf]
        %v1837 = vld [vmem:[#allocation12 + $0x1c] sm:$0xf]
        %v1838 = vld [vmem:[#allocation12 + $0x20] sm:$0xf]
        %v1839 = vld [vmem:[#allocation12 + $0x24] sm:$0xf]
        %v1840 = vld [vmem:[#allocation12 + $0x28] sm:$0xf]
        %v1841 = vld [vmem:[#allocation12 + $0x2c] sm:$0xf]
        %v1842 = vld [vmem:[#allocation12 + $0x30] sm:$0xf]
        %v1843 = vld [vmem:[#allocation12 + $0x34] sm:$0xf]
        %v1844 = vld [vmem:[#allocation12 + $0x38] sm:$0xf]
        %v1845 = vld [vmem:[#allocation12 + $0x3c] sm:$0xf]
        %v1846 = vld [vmem:[#allocation12 + $0x40] sm:$0xf]
        %v1847 = vld [vmem:[#allocation12 + $0x44] sm:$0xf]
        %v1848 = vld [vmem:[#allocation12 + $0x48] sm:$0xf]
        %v1849 = vld [vmem:[#allocation12 + $0x4c] sm:$0xf]
        %v1850 = vld [vmem:[#allocation12 + $0x50] sm:$0xf]
        %v1851 = vld [vmem:[#allocation12 + $0x54] sm:$0xf]
        %v1852 = vld [vmem:[#allocation12 + $0x58] sm:$0xf]
        %v1853 = vld [vmem:[#allocation12 + $0x5c] sm:$0xf]
        %v1854 = vld [vmem:[#allocation12 + $0x60] sm:$0xf]
        %v1855 = vld [vmem:[#allocation12 + $0x64] sm:$0xf]
        %v1856 = vld [vmem:[#allocation12 + $0x68] sm:$0xf]
        %v1857 = vld [vmem:[#allocation12 + $0x6c] sm:$0xf]
        %v1858 = vld [vmem:[#allocation12 + $0x70] sm:$0xf]
        %v1859 = vld [vmem:[#allocation12 + $0x74] sm:$0xf]
        %v1860 = vld [vmem:[#allocation12 + $0x78] sm:$0xf]
        %v1861 = vld [vmem:[#allocation12 + $0x7c] sm:$0xf]
        %v1862 = vld [vmem:[#allocation12 + $0x80] sm:$0xf]
        %v1863 = vld [vmem:[#allocation12 + $0x84] sm:$0xf]
        %v1864 = vld [vmem:[#allocation12 + $0x88] sm:$0xf]
        %v1865 = vld [vmem:[#allocation12 + $0x8c] sm:$0xf]
        %v1866 = vld [vmem:[#allocation12 + $0x90] sm:$0xf]
        %v1867 = vld [vmem:[#allocation12 + $0x94] sm:$0xf]
        %v1868 = vld [vmem:[#allocation12 + $0x98] sm:$0xf]
        %v1869 = vld [vmem:[#allocation12 + $0x9c] sm:$0xf]
        %v1870 = vld [vmem:[#allocation12 + $0xa0] sm:$0xf]
        %v1871 = vld [vmem:[#allocation12 + $0xa4] sm:$0xf]
        %v1872 = vld [vmem:[#allocation12 + $0xa8] sm:$0xf]
        %v1873 = vld [vmem:[#allocation12 + $0xac] sm:$0xf]
        %v1874 = vld [vmem:[#allocation12 + $0xb0] sm:$0xf]
        %v1875 = vld [vmem:[#allocation12 + $0xb4] sm:$0xf]
        %v1876 = vld [vmem:[#allocation12 + $0xb8] sm:$0xf]
        %v1877 = vld [vmem:[#allocation12 + $0xbc] sm:$0xf]
        %v1878 = vld [vmem:[#allocation12 + $0xc0] sm:$0xf]
        %v1879 = vld [vmem:[#allocation12 + $0xc4] sm:$0xf]
        %v1880 = vld [vmem:[#allocation12 + $0xc8] sm:$0xf]
        %v1881 = vld [vmem:[#allocation12 + $0xcc] sm:$0xf]
        %v1882 = vld [vmem:[#allocation12 + $0xd0] sm:$0xf]
        %v1883 = vld [vmem:[#allocation12 + $0xd4] sm:$0xf]
        %v1884 = vld [vmem:[#allocation12 + $0xd8] sm:$0xf]
        %v1885 = vld [vmem:[#allocation12 + $0xdc] sm:$0xf]
        %v1886 = vld [vmem:[#allocation12 + $0xe0] sm:$0xf]
        %v1887 = vld [vmem:[#allocation12 + $0xe4] sm:$0xf]
        %v1888 = vld [vmem:[#allocation12 + $0xe8] sm:$0xf]
        %v1889 = vld [vmem:[#allocation12 + $0xec] sm:$0xf]
        %v1890 = vld [vmem:[#allocation12 + $0xf0] sm:$0xf]
        %v1891 = vld [vmem:[#allocation12 + $0xf4] sm:$0xf]
        %v1892 = vld [vmem:[#allocation12 + $0xf8] sm:$0xf]
        %v1893 = vld [vmem:[#allocation12 + $0xfc] sm:$0xf]
        %v1894 = vld [vmem:[#allocation12 + $0x100] sm:$0xf]
        %v1895 = vld [vmem:[#allocation12 + $0x104] sm:$0xf]
        %v1896 = vld [vmem:[#allocation12 + $0x108] sm:$0xf]
        %v1897 = vld [vmem:[#allocation12 + $0x10c] sm:$0xf]
        %v1898 = vld [vmem:[#allocation12 + $0x110] sm:$0xf]
        %v1899 = vld [vmem:[#allocation12 + $0x114] sm:$0xf]
        %v1900 = vld [vmem:[#allocation12 + $0x118] sm:$0xf]
        %v1901 = vld [vmem:[#allocation12 + $0x11c] sm:$0xf]
        %v1902 = vld [vmem:[#allocation12 + $0x120] sm:$0xf]
        %v1903 = vld [vmem:[#allocation12 + $0x124] sm:$0xf]
        %v1904 = vld [vmem:[#allocation12 + $0x128] sm:$0xf]
        %v1905 = vld [vmem:[#allocation12 + $0x12c] sm:$0xf]
        %v1906 = vld [vmem:[#allocation12 + $0x130] sm:$0xf]
        %v1907 = vld [vmem:[#allocation12 + $0x134] sm:$0xf]
        %v1908 = vld [vmem:[#allocation12 + $0x138] sm:$0xf]
        %v1909 = vld [vmem:[#allocation12 + $0x13c] sm:$0xf]
        %v1919 = vunpack.c.l.b16 %v1821
        %v1920 = vunpack.c.h.b16 %v1821
        %v1921 = vunpack.c.l.b16 %v1822
        %v1922 = vunpack.c.h.b16 %v1822
        %v1923 = vunpack.c.l.b16 %v1823
        %v1924 = vunpack.c.l.b16 %v1824
        %v1925 = vunpack.c.h.b16 %v1824
        %v1926 = vunpack.c.l.b16 %v1825
        %v1927 = vunpack.c.h.b16 %v1825
        %v1928 = vunpack.c.l.b16 %v1826
        %v1929 = vunpack.c.l.b16 %v1827
        %v1930 = vunpack.c.h.b16 %v1827
        %v1931 = vunpack.c.l.b16 %v1828
        %v1932 = vunpack.c.h.b16 %v1828
        %v1933 = vunpack.c.l.b16 %v1829
        %v1934 = vpack.c.b16 %v1924, %v1919
        %v1935 = vpack.c.b16 %v1925, %v1920
        %v1936 = vpack.c.b16 %v1926, %v1921
        %v1937 = vpack.c.b16 %v1927, %v1922
        %v1938 = vpack.c.b16 %v1928, %v1923
        %v1939 = vpack.c.b16 %v1929, %v1929
        %v1940 = vpack.c.b16 %v1930, %v1930
        %v1941 = vpack.c.b16 %v1931, %v1931
        %v1942 = vpack.c.b16 %v1932, %v1932
        %v1943 = vpack.c.b16 %v1933, %v1933
        %v2034 = vunpack.c.l.b16 %v1830
        %v2035 = vunpack.c.l.b16 %v1831
        %v2036 = vunpack.c.l.b16 %v1832
        %v2037 = vunpack.c.l.b16 %v1833
        %v2038 = vunpack.c.l.b16 %v1834
        %v2039 = vunpack.c.l.b16 %v1835
        %v2040 = vunpack.c.l.b16 %v1836
        %v2041 = vunpack.c.l.b16 %v1837
        %v2042 = vunpack.c.l.b16 %v1838
        %v2043 = vunpack.c.l.b16 %v1839
        %v2044 = vunpack.c.l.b16 %v1840
        %v2045 = vunpack.c.l.b16 %v1841
        %v2046 = vunpack.c.l.b16 %v1842
        %v2047 = vunpack.c.l.b16 %v1843
        %v2048 = vunpack.c.l.b16 %v1844
        %v2049 = vunpack.c.l.b16 %v1845
        %v2050 = vunpack.c.l.b16 %v1846
        %v2051 = vunpack.c.l.b16 %v1847
        %v2052 = vunpack.c.l.b16 %v1848
        %v2053 = vunpack.c.l.b16 %v1849
        %v2054 = vunpack.c.l.b16 %v1850
        %v2055 = vunpack.c.l.b16 %v1851
        %v2056 = vunpack.c.l.b16 %v1852
        %v2057 = vunpack.c.l.b16 %v1853
        %v2058 = vunpack.c.l.b16 %v1854
        %v2059 = vunpack.c.l.b16 %v1855
        %v2060 = vunpack.c.l.b16 %v1856
        %v2061 = vunpack.c.l.b16 %v1857
        %v2062 = vunpack.c.l.b16 %v1858
        %v2063 = vunpack.c.l.b16 %v1859
        %v2064 = vunpack.c.l.b16 %v1860
        %v2065 = vunpack.c.l.b16 %v1861
        %v2066 = vunpack.c.l.b16 %v1862
        %v2067 = vunpack.c.l.b16 %v1863
        %v2068 = vunpack.c.l.b16 %v1864
        %v2069 = vunpack.c.l.b16 %v1865
        %v2070 = vunpack.c.l.b16 %v1866
        %v2071 = vunpack.c.l.b16 %v1867
        %v2072 = vunpack.c.l.b16 %v1868
        %v2073 = vunpack.c.l.b16 %v1869
        %v2074 = vunpack.c.l.b16 %v1870
        %v2075 = vunpack.c.l.b16 %v1871
        %v2076 = vunpack.c.l.b16 %v1872
        %v2077 = vunpack.c.l.b16 %v1873
        %v2078 = vunpack.c.l.b16 %v1874
        %v2079 = vunpack.c.l.b16 %v1875
        %v2080 = vunpack.c.l.b16 %v1876
        %v2081 = vunpack.c.l.b16 %v1877
        %v2082 = vunpack.c.l.b16 %v1878
        %v2083 = vunpack.c.l.b16 %v1879
        %v2084 = vunpack.c.l.b16 %v1880
        %v2085 = vunpack.c.l.b16 %v1881
        %v2086 = vunpack.c.l.b16 %v1882
        %v2087 = vunpack.c.l.b16 %v1883
        %v2088 = vunpack.c.l.b16 %v1884
        %v2089 = vunpack.c.l.b16 %v1885
        %v2090 = vunpack.c.l.b16 %v1886
        %v2091 = vunpack.c.l.b16 %v1887
        %v2092 = vunpack.c.l.b16 %v1888
        %v2093 = vunpack.c.l.b16 %v1889
        %v2094 = vunpack.c.l.b16 %v1890
        %v2095 = vunpack.c.l.b16 %v1891
        %v2096 = vunpack.c.l.b16 %v1892
        %v2097 = vunpack.c.l.b16 %v1893
        %v2098 = vunpack.c.l.b16 %v1894
        %v2099 = vunpack.c.l.b16 %v1895
        %v2100 = vunpack.c.l.b16 %v1896
        %v2101 = vunpack.c.l.b16 %v1897
        %v2102 = vunpack.c.l.b16 %v1898
        %v2103 = vunpack.c.l.b16 %v1899
        %v2104 = vunpack.c.l.b16 %v1900
        %v2105 = vunpack.c.l.b16 %v1901
        %v2106 = vunpack.c.l.b16 %v1902
        %v2107 = vunpack.c.l.b16 %v1903
        %v2108 = vunpack.c.l.b16 %v1904
        %v2109 = vunpack.c.l.b16 %v1905
        %v2110 = vunpack.c.l.b16 %v1906
        %v2111 = vunpack.c.l.b16 %v1907
        %v2112 = vunpack.c.l.b16 %v1908
        %v2113 = vunpack.c.l.b16 %v1909
        %v2114 = vpack.c.b16 %v2035, %v2034
        %v2115 = vpack.c.b16 %v2037, %v2036
        %v2116 = vpack.c.b16 %v2039, %v2038
        %v2117 = vpack.c.b16 %v2041, %v2040
        %v2118 = vpack.c.b16 %v2043, %v2042
        %v2119 = vpack.c.b16 %v2045, %v2044
        %v2120 = vpack.c.b16 %v2047, %v2046
        %v2121 = vpack.c.b16 %v2049, %v2048
        %v2122 = vpack.c.b16 %v2051, %v2050
        %v2123 = vpack.c.b16 %v2053, %v2052
        %v2124 = vpack.c.b16 %v2055, %v2054
        %v2125 = vpack.c.b16 %v2057, %v2056
        %v2126 = vpack.c.b16 %v2059, %v2058
        %v2127 = vpack.c.b16 %v2061, %v2060
        %v2128 = vpack.c.b16 %v2063, %v2062
        %v2129 = vpack.c.b16 %v2065, %v2064
        %v2130 = vpack.c.b16 %v2067, %v2066
        %v2131 = vpack.c.b16 %v2069, %v2068
        %v2132 = vpack.c.b16 %v2071, %v2070
        %v2133 = vpack.c.b16 %v2073, %v2072
        %v2134 = vpack.c.b16 %v2075, %v2074
        %v2135 = vpack.c.b16 %v2077, %v2076
        %v2136 = vpack.c.b16 %v2079, %v2078
        %v2137 = vpack.c.b16 %v2081, %v2080
        %v2138 = vpack.c.b16 %v2083, %v2082
        %v2139 = vpack.c.b16 %v2085, %v2084
        %v2140 = vpack.c.b16 %v2087, %v2086
        %v2141 = vpack.c.b16 %v2089, %v2088
        %v2142 = vpack.c.b16 %v2091, %v2090
        %v2143 = vpack.c.b16 %v2093, %v2092
        %v2144 = vpack.c.b16 %v2095, %v2094
        %v2145 = vpack.c.b16 %v2097, %v2096
        %v2146 = vpack.c.b16 %v2099, %v2098
        %v2147 = vpack.c.b16 %v2101, %v2100
        %v2148 = vpack.c.b16 %v2103, %v2102
        %v2149 = vpack.c.b16 %v2105, %v2104
        %v2150 = vpack.c.b16 %v2107, %v2106
        %v2151 = vpack.c.b16 %v2109, %v2108
        %v2152 = vpack.c.b16 %v2111, %v2110
        %v2153 = vpack.c.b16 %v2113, %v2112
        %2194 = vmatpush.bf16.msra.mxu0 %v2121
        %2195 = vmatpush.bf16.msra.mxu0 %v2120
        %2196 = vmatpush.bf16.msra.mxu0 %v2119
        %2197 = vmatpush.bf16.msra.mxu0 %v2118
        %2198 = vmatpush.bf16.msra.mxu0 %v2117
        %2199 = vmatpush.bf16.msra.mxu0 %v2116
        %2200 = vmatpush.bf16.msra.mxu0 %v2115
        %2201 = vmatpush.bf16.msra.mxu0 %v2114
        %2202 = vmatmul.bf16.gmra.mxu0 %v1934
        %v2203 = vpop.f32.mrf.mxu0
        %v2204 = vadd.f32 0.0, %v2203
        %v2205 = vpop.f32.mrf.mxu0
        %v2206 = vadd.f32 0.0, %v2205
        %2207 = vmatmul.bf16.gmra.mxu0 %v1939
        %v2208 = vpop.f32.mrf.mxu0
        %v2209 = vadd.f32 0.0, %v2208
        %v2210 = vpop.f32.mrf.mxu0
        %2211 = vdwg.mxu0
        %2212 = vmatpush.bf16.msra.mxu0 %v2129
        %2213 = vmatpush.bf16.msra.mxu0 %v2128
        %2214 = vmatpush.bf16.msra.mxu0 %v2127
        %2215 = vmatpush.bf16.msra.mxu0 %v2126
        %2216 = vmatpush.bf16.msra.mxu0 %v2125
        %2217 = vmatpush.bf16.msra.mxu0 %v2124
        %2218 = vmatpush.bf16.msra.mxu0 %v2123
        %2219 = vmatpush.bf16.msra.mxu0 %v2122
        %2220 = vmatmul.bf16.gmra.mxu0 %v1935
        %v2221 = vpop.f32.mrf.mxu0
        %v2222 = vadd.f32 %v2204, %v2221
        %v2223 = vpop.f32.mrf.mxu0
        %v2224 = vadd.f32 %v2206, %v2223
        %2225 = vmatmul.bf16.gmra.mxu0 %v1940
        %v2226 = vpop.f32.mrf.mxu0
        %v2227 = vadd.f32 %v2209, %v2226
        %v2228 = vpop.f32.mrf.mxu0
        %2229 = vdwg.mxu0
        %2230 = vmatpush.bf16.msra.mxu0 %v2137
        %2231 = vmatpush.bf16.msra.mxu0 %v2136
        %2232 = vmatpush.bf16.msra.mxu0 %v2135
        %2233 = vmatpush.bf16.msra.mxu0 %v2134
        %2234 = vmatpush.bf16.msra.mxu0 %v2133
        %2235 = vmatpush.bf16.msra.mxu0 %v2132
        %2236 = vmatpush.bf16.msra.mxu0 %v2131
        %2237 = vmatpush.bf16.msra.mxu0 %v2130
        %2238 = vmatmul.bf16.gmra.mxu0 %v1936
        %v2239 = vpop.f32.mrf.mxu0
        %v2240 = vadd.f32 %v2222, %v2239
        %v2241 = vpop.f32.mrf.mxu0
        %v2242 = vadd.f32 %v2224, %v2241
        %2243 = vmatmul.bf16.gmra.mxu0 %v1941
        %v2244 = vpop.f32.mrf.mxu0
        %v2245 = vadd.f32 %v2227, %v2244
        %v2246 = vpop.f32.mrf.mxu0
        %2247 = vdwg.mxu0
        %2248 = vmatpush.bf16.msra.mxu0 %v2145
        %2249 = vmatpush.bf16.msra.mxu0 %v2144
        %2250 = vmatpush.bf16.msra.mxu0 %v2143
        %2251 = vmatpush.bf16.msra.mxu0 %v2142
        %2252 = vmatpush.bf16.msra.mxu0 %v2141
        %2253 = vmatpush.bf16.msra.mxu0 %v2140
        %2254 = vmatpush.bf16.msra.mxu0 %v2139
        %2255 = vmatpush.bf16.msra.mxu0 %v2138
        %2256 = vmatmul.bf16.gmra.mxu0 %v1937
        %v2257 = vpop.f32.mrf.mxu0
        %v2258 = vadd.f32 %v2240, %v2257
        %v2259 = vpop.f32.mrf.mxu0
        %v2260 = vadd.f32 %v2242, %v2259
        %2261 = vmatmul.bf16.gmra.mxu0 %v1942
        %v2262 = vpop.f32.mrf.mxu0
        %v2263 = vadd.f32 %v2245, %v2262
        %v2264 = vpop.f32.mrf.mxu0
        %2265 = vdwg.mxu0
        %2266 = vmatpush.bf16.msra.mxu0 %v2153
        %2267 = vmatpush.bf16.msra.mxu0 %v2152
        %2268 = vmatpush.bf16.msra.mxu0 %v2151
        %2269 = vmatpush.bf16.msra.mxu0 %v2150
        %2270 = vmatpush.bf16.msra.mxu0 %v2149
        %2271 = vmatpush.bf16.msra.mxu0 %v2148
        %2272 = vmatpush.bf16.msra.mxu0 %v2147
        %2273 = vmatpush.bf16.msra.mxu0 %v2146
        %2274 = vmatmul.bf16.gmra.mxu0 %v1938
        %v2275 = vpop.f32.mrf.mxu0
        %v2276 = vadd.f32 %v2258, %v2275
        %v2277 = vpop.f32.mrf.mxu0
        %v2278 = vadd.f32 %v2260, %v2277
        %2279 = vmatmul.bf16.gmra.mxu0 %v1943
        %v2280 = vpop.f32.mrf.mxu0
        %v2281 = vadd.f32 %v2263, %v2280
        %v2282 = vpop.f32.mrf.mxu0
        %2283 = vdwg.mxu0
        %v2284 = vld [vmem:[%s7] sm:$0x1]
        %v2286 = vperm.slane %v2284, 0
        %v2288 = vmul.f32 %v2276, %v2286
        %v2289 = vmul.f32 %v2278, %v2286
        %v2290 = vmul.f32 %v2281, %v2286
        %v2291 = vld [vmem:[%s8] sm:$0x1]
        %v2293 = vperm.slane %v2291, 0
        %v2295 = vadd.f32 %v2288, %v2293
        %v2296 = vadd.f32 %v2289, %v2293
        %v2297 = vadd.f32 %v2290, %v2293
        %v2298 = vmax.f32 %v2295, 0.0
        %v2299 = vmax.f32 %v2296, 0.0
        %v2300 = vmax.f32 %v2297, 0.0
        %s2301 = sadd.s32 %s717, 4294967293
        %v2302 = vstv %s2301
        %v2303 = vadd.s32 %v2302, %v1687
        %v2304 = vadd.s32 %v2302, %v1688
        %v2305 = vadd.s32 %v2302, %v1689
        %vm2306 = vcmp.ge.s32.totalorder %v2303, 0
        %vm2307 = vcmp.ge.s32.totalorder %v2304, 0
        %vm2308 = vcmp.ge.s32.totalorder %v2305, 0
        %vm2309 = vcmp.lt.s32.totalorder %v2303, 40
        %vm2310 = vcmp.lt.s32.totalorder %v2304, 40
        %vm2311 = vcmp.lt.s32.totalorder %v2305, 40
        %vm2312 = vmand %vm2306, %vm2309
        %vm2313 = vmand %vm2307, %vm2310
        %vm2314 = vmand %vm2308, %vm2311
        %v2315 = vsel %vm2312, 1, 0
        %v2316 = vsel %vm2313, 1, 0
        %v2317 = vsel %vm2314, 1, 0
        %vm2318 = vcmp.eq.s32.totalorder %v2315, 1
        %vm2319 = vcmp.eq.s32.totalorder %v2316, 1
        %vm2320 = vcmp.eq.s32.totalorder %v2317, 1
        %v2321 = vsel %vm2318, %v2298, 0.0
        %v2322 = vsel %vm2319, %v2299, 0.0
        %v2323 = vsel %vm2320, %v2300, 0.0
        %v2324 = vpack.c.bf16 %v2321, %v2321
        %v2325 = vpack.c.bf16 %v2322, %v2322
        %v2326 = vpack.c.bf16 %v2323, %v2323
        %2327 = vst [vmem:[#allocation3] sm:$0xf] %v2324
        %2328 = vst [vmem:[#allocation3 + $0x1c] sm:$0xf] %v2325
        %2329 = vst [vmem:[#allocation3 + $0x38] sm:$0x3] %v2326
        %v2331 = vshrl.u32 %v2324, 16
        %v2333 = vrot.slane %v2331, 4
        %v2334 = vshll.u32 %v2324, 16
        %v2336 = vrot.slane %v2334, 5
        %v2337 = vor.u32 %v2333, %v2336
        %v2338 = vrot.slane %v2337, 4
        %v2340 = vshll.u32 %v2325, 16
        %v2342 = vrot.slane %v2340, 5
        %v2343 = vsel %vm750, %v2338, %v2342
        %v2344 = vshrl.u32 %v2325, 16
        %v2346 = vrot.slane %v2344, 4
        %v2347 = vor.u32 %v2346, %v2342
        %v2348 = vrot.slane %v2347, 4
        %v2350 = vshll.u32 %v2326, 16
        %v2352 = vrot.slane %v2350, 5
        %v2353 = vsel %vm750, %v2348, %v2352
        %v2354 = vshrl.u32 %v2326, 16
        %v2356 = vrot.slane %v2354, 4
        %v2357 = vor.u32 %v2356, %v2352
        %v2358 = vrot.slane %v2357, 4
        %2362 = vst [vmem:[#allocation3 + $0x4] sm:$0xf] %v2343
        %2363 = vst [vmem:[#allocation3 + $0x20] sm:$0xf] %v2353
        %2364 = vst [vmem:[#allocation3 + $0x3c] sm:$0x3] %v2358
        %v2368 = vrot.slane %v2324, 5
        %v2369 = vrot.slane %v2368, 4
        %v2370 = vrot.slane %v2325, 5
        %v2371 = vsel %vm808, %v2369, %v2370
        %v2372 = vrot.slane %v2370, 4
        %v2373 = vrot.slane %v2326, 5
        %v2374 = vsel %vm808, %v2372, %v2373
        %v2375 = vrot.slane %v2373, 4
        %2379 = vst [vmem:[#allocation3 + $0x8] sm:$0xf] %v2371
        %2380 = vst [vmem:[#allocation3 + $0x24] sm:$0xf] %v2374
        %2381 = vst [vmem:[#allocation3 + $0x40] sm:$0x3] %v2375
        %v2382 = vld [vmem:[#allocation3] sm:$0xff]
        %v2383 = vld [vmem:[#allocation3 + $0x8] sm:$0xf]
        %v2384 = vld [vmem:[#allocation3 + $0x1c] sm:$0xff]
        %v2385 = vld [vmem:[#allocation3 + $0x24] sm:$0xf]
        %v2386 = vld [vmem:[#allocation3 + $0x38] sm:$0x33]
        %v2387 = vld [vmem:[#allocation3 + $0x40] sm:$0x3]
        %v2388 = vld [vmem:[#allocation13] sm:$0xf]
        %v2389 = vld [vmem:[#allocation13 + $0x4] sm:$0xf]
        %v2390 = vld [vmem:[#allocation13 + $0x8] sm:$0xf]
        %v2391 = vld [vmem:[#allocation13 + $0xc] sm:$0xf]
        %v2392 = vld [vmem:[#allocation13 + $0x10] sm:$0xf]
        %v2393 = vld [vmem:[#allocation13 + $0x14] sm:$0xf]
        %v2394 = vld [vmem:[#allocation13 + $0x18] sm:$0xf]
        %v2395 = vld [vmem:[#allocation13 + $0x1c] sm:$0xf]
        %v2396 = vld [vmem:[#allocation13 + $0x20] sm:$0xf]
        %v2397 = vld [vmem:[#allocation13 + $0x24] sm:$0xf]
        %v2398 = vld [vmem:[#allocation13 + $0x28] sm:$0xf]
        %v2399 = vld [vmem:[#allocation13 + $0x2c] sm:$0xf]
        %v2400 = vld [vmem:[#allocation13 + $0x30] sm:$0xf]
        %v2401 = vld [vmem:[#allocation13 + $0x34] sm:$0xf]
        %v2402 = vld [vmem:[#allocation13 + $0x38] sm:$0xf]
        %v2403 = vld [vmem:[#allocation13 + $0x3c] sm:$0xf]
        %v2404 = vld [vmem:[#allocation13 + $0x40] sm:$0xf]
        %v2405 = vld [vmem:[#allocation13 + $0x44] sm:$0xf]
        %v2406 = vld [vmem:[#allocation13 + $0x48] sm:$0xf]
        %v2407 = vld [vmem:[#allocation13 + $0x4c] sm:$0xf]
        %v2408 = vld [vmem:[#allocation13 + $0x50] sm:$0xf]
        %v2409 = vld [vmem:[#allocation13 + $0x54] sm:$0xf]
        %v2410 = vld [vmem:[#allocation13 + $0x58] sm:$0xf]
        %v2411 = vld [vmem:[#allocation13 + $0x5c] sm:$0xf]
        %v2412 = vld [vmem:[#allocation13 + $0x60] sm:$0xf]
        %v2413 = vld [vmem:[#allocation13 + $0x64] sm:$0xf]
        %v2414 = vld [vmem:[#allocation13 + $0x68] sm:$0xf]
        %v2415 = vld [vmem:[#allocation13 + $0x6c] sm:$0xf]
        %v2416 = vld [vmem:[#allocation13 + $0x70] sm:$0xf]
        %v2417 = vld [vmem:[#allocation13 + $0x74] sm:$0xf]
        %v2418 = vld [vmem:[#allocation13 + $0x78] sm:$0xf]
        %v2419 = vld [vmem:[#allocation13 + $0x7c] sm:$0xf]
        %v2420 = vld [vmem:[#allocation13 + $0x80] sm:$0xf]
        %v2421 = vld [vmem:[#allocation13 + $0x84] sm:$0xf]
        %v2422 = vld [vmem:[#allocation13 + $0x88] sm:$0xf]
        %v2423 = vld [vmem:[#allocation13 + $0x8c] sm:$0xf]
        %v2424 = vld [vmem:[#allocation13 + $0x90] sm:$0xf]
        %v2425 = vld [vmem:[#allocation13 + $0x94] sm:$0xf]
        %v2426 = vld [vmem:[#allocation13 + $0x98] sm:$0xf]
        %v2427 = vld [vmem:[#allocation13 + $0x9c] sm:$0xf]
        %v2428 = vld [vmem:[#allocation13 + $0xa0] sm:$0xf]
        %v2429 = vld [vmem:[#allocation13 + $0xa4] sm:$0xf]
        %v2430 = vld [vmem:[#allocation13 + $0xa8] sm:$0xf]
        %v2431 = vld [vmem:[#allocation13 + $0xac] sm:$0xf]
        %v2432 = vld [vmem:[#allocation13 + $0xb0] sm:$0xf]
        %v2433 = vld [vmem:[#allocation13 + $0xb4] sm:$0xf]
        %v2434 = vld [vmem:[#allocation13 + $0xb8] sm:$0xf]
        %v2435 = vld [vmem:[#allocation13 + $0xbc] sm:$0xf]
        %v2442 = vunpack.c.l.b16 %v2382
        %v2443 = vunpack.c.h.b16 %v2382
        %v2444 = vunpack.c.l.b16 %v2383
        %v2445 = vunpack.c.l.b16 %v2384
        %v2446 = vunpack.c.h.b16 %v2384
        %v2447 = vunpack.c.l.b16 %v2385
        %v2448 = vunpack.c.l.b16 %v2386
        %v2449 = vunpack.c.h.b16 %v2386
        %v2450 = vunpack.c.l.b16 %v2387
        %v2451 = vpack.c.b16 %v2445, %v2442
        %v2452 = vpack.c.b16 %v2446, %v2443
        %v2453 = vpack.c.b16 %v2447, %v2444
        %v2454 = vpack.c.b16 %v2448, %v2448
        %v2455 = vpack.c.b16 %v2449, %v2449
        %v2456 = vpack.c.b16 %v2450, %v2450
        %v2511 = vunpack.c.l.b16 %v2388
        %v2512 = vunpack.c.l.b16 %v2389
        %v2513 = vunpack.c.l.b16 %v2390
        %v2514 = vunpack.c.l.b16 %v2391
        %v2515 = vunpack.c.l.b16 %v2392
        %v2516 = vunpack.c.l.b16 %v2393
        %v2517 = vunpack.c.l.b16 %v2394
        %v2518 = vunpack.c.l.b16 %v2395
        %v2519 = vunpack.c.l.b16 %v2396
        %v2520 = vunpack.c.l.b16 %v2397
        %v2521 = vunpack.c.l.b16 %v2398
        %v2522 = vunpack.c.l.b16 %v2399
        %v2523 = vunpack.c.l.b16 %v2400
        %v2524 = vunpack.c.l.b16 %v2401
        %v2525 = vunpack.c.l.b16 %v2402
        %v2526 = vunpack.c.l.b16 %v2403
        %v2527 = vunpack.c.l.b16 %v2404
        %v2528 = vunpack.c.l.b16 %v2405
        %v2529 = vunpack.c.l.b16 %v2406
        %v2530 = vunpack.c.l.b16 %v2407
        %v2531 = vunpack.c.l.b16 %v2408
        %v2532 = vunpack.c.l.b16 %v2409
        %v2533 = vunpack.c.l.b16 %v2410
        %v2534 = vunpack.c.l.b16 %v2411
        %v2535 = vunpack.c.l.b16 %v2412
        %v2536 = vunpack.c.l.b16 %v2413
        %v2537 = vunpack.c.l.b16 %v2414
        %v2538 = vunpack.c.l.b16 %v2415
        %v2539 = vunpack.c.l.b16 %v2416
        %v2540 = vunpack.c.l.b16 %v2417
        %v2541 = vunpack.c.l.b16 %v2418
        %v2542 = vunpack.c.l.b16 %v2419
        %v2543 = vunpack.c.l.b16 %v2420
        %v2544 = vunpack.c.l.b16 %v2421
        %v2545 = vunpack.c.l.b16 %v2422
        %v2546 = vunpack.c.l.b16 %v2423
        %v2547 = vunpack.c.l.b16 %v2424
        %v2548 = vunpack.c.l.b16 %v2425
        %v2549 = vunpack.c.l.b16 %v2426
        %v2550 = vunpack.c.l.b16 %v2427
        %v2551 = vunpack.c.l.b16 %v2428
        %v2552 = vunpack.c.l.b16 %v2429
        %v2553 = vunpack.c.l.b16 %v2430
        %v2554 = vunpack.c.l.b16 %v2431
        %v2555 = vunpack.c.l.b16 %v2432
        %v2556 = vunpack.c.l.b16 %v2433
        %v2557 = vunpack.c.l.b16 %v2434
        %v2558 = vunpack.c.l.b16 %v2435
        %v2559 = vpack.c.b16 %v2512, %v2511
        %v2560 = vpack.c.b16 %v2514, %v2513
        %v2561 = vpack.c.b16 %v2516, %v2515
        %v2562 = vpack.c.b16 %v2518, %v2517
        %v2563 = vpack.c.b16 %v2520, %v2519
        %v2564 = vpack.c.b16 %v2522, %v2521
        %v2565 = vpack.c.b16 %v2524, %v2523
        %v2566 = vpack.c.b16 %v2526, %v2525
        %v2567 = vpack.c.b16 %v2528, %v2527
        %v2568 = vpack.c.b16 %v2530, %v2529
        %v2569 = vpack.c.b16 %v2532, %v2531
        %v2570 = vpack.c.b16 %v2534, %v2533
        %v2571 = vpack.c.b16 %v2536, %v2535
        %v2572 = vpack.c.b16 %v2538, %v2537
        %v2573 = vpack.c.b16 %v2540, %v2539
        %v2574 = vpack.c.b16 %v2542, %v2541
        %v2575 = vpack.c.b16 %v2544, %v2543
        %v2576 = vpack.c.b16 %v2546, %v2545
        %v2577 = vpack.c.b16 %v2548, %v2547
        %v2578 = vpack.c.b16 %v2550, %v2549
        %v2579 = vpack.c.b16 %v2552, %v2551
        %v2580 = vpack.c.b16 %v2554, %v2553
        %v2581 = vpack.c.b16 %v2556, %v2555
        %v2582 = vpack.c.b16 %v2558, %v2557
        %2607 = vmatpush.bf16.msra.mxu0 %v2566
        %2608 = vmatpush.bf16.msra.mxu0 %v2565
        %2609 = vmatpush.bf16.msra.mxu0 %v2564
        %2610 = vmatpush.bf16.msra.mxu0 %v2563
        %2611 = vmatpush.bf16.msra.mxu0 %v2562
        %2612 = vmatpush.bf16.msra.mxu0 %v2561
        %2613 = vmatpush.bf16.msra.mxu0 %v2560
        %2614 = vmatpush.bf16.msra.mxu0 %v2559
        %2615 = vmatmul.bf16.gmra.mxu0 %v2451
        %v2616 = vpop.f32.mrf.mxu0
        %v2617 = vadd.f32 0.0, %v2616
        %v2618 = vpop.f32.mrf.mxu0
        %v2619 = vadd.f32 0.0, %v2618
        %2620 = vmatmul.bf16.gmra.mxu0 %v2454
        %v2621 = vpop.f32.mrf.mxu0
        %v2622 = vadd.f32 0.0, %v2621
        %v2623 = vpop.f32.mrf.mxu0
        %2624 = vdwg.mxu0
        %2625 = vmatpush.bf16.msra.mxu0 %v2574
        %2626 = vmatpush.bf16.msra.mxu0 %v2573
        %2627 = vmatpush.bf16.msra.mxu0 %v2572
        %2628 = vmatpush.bf16.msra.mxu0 %v2571
        %2629 = vmatpush.bf16.msra.mxu0 %v2570
        %2630 = vmatpush.bf16.msra.mxu0 %v2569
        %2631 = vmatpush.bf16.msra.mxu0 %v2568
        %2632 = vmatpush.bf16.msra.mxu0 %v2567
        %2633 = vmatmul.bf16.gmra.mxu0 %v2452
        %v2634 = vpop.f32.mrf.mxu0
        %v2635 = vadd.f32 %v2617, %v2634
        %v2636 = vpop.f32.mrf.mxu0
        %v2637 = vadd.f32 %v2619, %v2636
        %2638 = vmatmul.bf16.gmra.mxu0 %v2455
        %v2639 = vpop.f32.mrf.mxu0
        %v2640 = vadd.f32 %v2622, %v2639
        %v2641 = vpop.f32.mrf.mxu0
        %2642 = vdwg.mxu0
        %2643 = vmatpush.bf16.msra.mxu0 %v2582
        %2644 = vmatpush.bf16.msra.mxu0 %v2581
        %2645 = vmatpush.bf16.msra.mxu0 %v2580
        %2646 = vmatpush.bf16.msra.mxu0 %v2579
        %2647 = vmatpush.bf16.msra.mxu0 %v2578
        %2648 = vmatpush.bf16.msra.mxu0 %v2577
        %2649 = vmatpush.bf16.msra.mxu0 %v2576
        %2650 = vmatpush.bf16.msra.mxu0 %v2575
        %2651 = vmatmul.bf16.gmra.mxu0 %v2453
        %v2652 = vpop.f32.mrf.mxu0
        %v2653 = vadd.f32 %v2635, %v2652
        %v2654 = vpop.f32.mrf.mxu0
        %v2655 = vadd.f32 %v2637, %v2654
        %2656 = vmatmul.bf16.gmra.mxu0 %v2456
        %v2657 = vpop.f32.mrf.mxu0
        %v2658 = vadd.f32 %v2640, %v2657
        %v2659 = vpop.f32.mrf.mxu0
        %2660 = vdwg.mxu0
        %v2661 = vld [vmem:[%s10] sm:$0x1]
        %v2663 = vperm.slane %v2661, 0
        %v2665 = vmul.f32 %v2653, %v2663
        %v2666 = vmul.f32 %v2655, %v2663
        %v2667 = vmul.f32 %v2658, %v2663
        %v2668 = vld [vmem:[%s11] sm:$0x1]
        %v2670 = vperm.slane %v2668, 0
        %v2672 = vadd.f32 %v2665, %v2670
        %v2673 = vadd.f32 %v2666, %v2670
        %v2674 = vadd.f32 %v2667, %v2670
        %v2675 = vld [vmem:[%s618] sm:$0xf]
        %v2676 = vld [vmem:[%s618 + $0x4] sm:$0xf]
        %v2677 = vld [vmem:[#allocation15] sm:$0xf]
        %v2678 = vld [vmem:[#allocation15 + $0x4] sm:$0xf]
        %v2679 = vld [vmem:[#allocation15 + $0x8] sm:$0xf]
        %v2680 = vld [vmem:[#allocation15 + $0xc] sm:$0xf]
        %v2681 = vld [vmem:[#allocation15 + $0x10] sm:$0xf]
        %v2682 = vld [vmem:[#allocation15 + $0x14] sm:$0xf]
        %v2683 = vld [vmem:[#allocation15 + $0x18] sm:$0xf]
        %v2684 = vld [vmem:[#allocation15 + $0x1c] sm:$0xf]
        %v2685 = vld [vmem:[#allocation15 + $0x20] sm:$0xf]
        %v2686 = vld [vmem:[#allocation15 + $0x24] sm:$0xf]
        %v2687 = vld [vmem:[#allocation15 + $0x28] sm:$0xf]
        %v2688 = vld [vmem:[#allocation15 + $0x2c] sm:$0xf]
        %v2689 = vld [vmem:[#allocation15 + $0x30] sm:$0xf]
        %v2690 = vld [vmem:[#allocation15 + $0x34] sm:$0xf]
        %v2691 = vld [vmem:[#allocation15 + $0x38] sm:$0xf]
        %v2692 = vld [vmem:[#allocation15 + $0x3c] sm:$0xf]
        %v2695 = vunpack.c.l.b16 %v2675
        %v2696 = vunpack.c.l.b16 %v2676
        %v2697 = vpack.c.b16 %v2696, %v2695
        %v2715 = vunpack.c.l.b16 %v2677
        %v2716 = vunpack.c.l.b16 %v2678
        %v2717 = vunpack.c.l.b16 %v2679
        %v2718 = vunpack.c.l.b16 %v2680
        %v2719 = vunpack.c.l.b16 %v2681
        %v2720 = vunpack.c.l.b16 %v2682
        %v2721 = vunpack.c.l.b16 %v2683
        %v2722 = vunpack.c.l.b16 %v2684
        %v2723 = vunpack.c.l.b16 %v2685
        %v2724 = vunpack.c.l.b16 %v2686
        %v2725 = vunpack.c.l.b16 %v2687
        %v2726 = vunpack.c.l.b16 %v2688
        %v2727 = vunpack.c.l.b16 %v2689
        %v2728 = vunpack.c.l.b16 %v2690
        %v2729 = vunpack.c.l.b16 %v2691
        %v2730 = vunpack.c.l.b16 %v2692
        %v2731 = vpack.c.b16 %v2716, %v2715
        %v2732 = vpack.c.b16 %v2718, %v2717
        %v2733 = vpack.c.b16 %v2720, %v2719
        %v2734 = vpack.c.b16 %v2722, %v2721
        %v2735 = vpack.c.b16 %v2724, %v2723
        %v2736 = vpack.c.b16 %v2726, %v2725
        %v2737 = vpack.c.b16 %v2728, %v2727
        %v2738 = vpack.c.b16 %v2730, %v2729
        %2747 = vmatpush.bf16.msra.mxu0 %v2738
        %2748 = vmatpush.bf16.msra.mxu0 %v2737
        %2749 = vmatpush.bf16.msra.mxu0 %v2736
        %2750 = vmatpush.bf16.msra.mxu0 %v2735
        %2751 = vmatpush.bf16.msra.mxu0 %v2734
        %2752 = vmatpush.bf16.msra.mxu0 %v2733
        %2753 = vmatpush.bf16.msra.mxu0 %v2732
        %2754 = vmatpush.bf16.msra.mxu0 %v2731
        %2755 = vmatmul.bf16.gmra.mxu0 %v2697
        %v2756 = vpop.f32.mrf.mxu0
        %v2757 = vadd.f32 0.0, %v2756
        %v2758 = vpop.f32.mrf.mxu0
        %v2759 = vadd.f32 0.0, %v2758
        %2760 = vdwg.mxu0
        %v2761 = vld [vmem:[%s13] sm:$0x1]
        %v2763 = vperm.slane %v2761, 0
        %v2765 = vmul.f32 %v2757, %v2763
        %v2766 = vmul.f32 %v2759, %v2763
        %v2767 = vld [vmem:[%s14] sm:$0x1]
        %v2769 = vperm.slane %v2767, 0
        %v2771 = vadd.f32 %v2765, %v2769
        %v2772 = vadd.f32 %v2766, %v2769
        %vm2775 = vcmask 1041408
        %v2776 = vrot.slane %v2771, 6
        %v2777 = vrot.slane %v2772, 6
        %v2778 = vsel %vm2775, %v2776, %v2777
        %v2782 = vadd.f32 %v2672, %v2776
        %v2783 = vadd.f32 %v2673, %v2778
        %v2784 = vadd.f32 %v2674, %v2777
        %v2785 = vmax.f32 %v2782, 0.0
        %v2786 = vmax.f32 %v2783, 0.0
        %v2787 = vmax.f32 %v2784, 0.0
        %2788 = vst [vmem:[%s705 - $0x2] sm:$0xfc] %v2785
        %2789 = vst [vmem:[%s705 + $0x6] sm:$0xff] %v2786
        %2790 = vst [vmem:[%s705 + $0xe] sm:$0x3] %v2787
        %s2791 = sand.u32 %s411, 1
        %s2792 = scalar_lea.sflag [#allocation6], %s2791
        %s2793 = sand.u32 %s411, 1
        %s2794 = smul.addr %s2793, 16
        %s2795 = scalar_lea.vmem [#allocation16], %s2794
        // Predicated region
        $region109: #{tpu_custom_call.1} parent=79 // pred_check
          %p2796 = pneg %p421
        $region110: #{tpu_custom_call.1} parent=79 // pred_check_branch
          %2798 = sbr.rel (%p2796) target = $region112
        $region111: #{tpu_custom_call.1} parent=79 // pred_region
          %s2799 = smul.u32 2, %s42
          %2801 = vsyncadd %s2792, 0
          %s2802 = smul.addr %s41, 6
          %s2803 = sadd.s32 %s2799, %s2802
          %s2804 = smul.addr %s2803, 8
          %s2805 = scalar_lea.hbm %s15, %s2804
          %s2806 = sshll.u32 %s2795, 4
          %s2807 = int_to_ptr.vmem [resolvable:$true] %s2806
          %s2808 = sshll.u32 %s2805, 4
          %s2809 = int_to_ptr.hbm [resolvable:$true] %s2808
          %2814 = dma.vmem_to_hbm [thread:$0]  %s2807, 256, %s2809, %s2792, 128, 128, 8
        $region112: #{tpu_custom_call.1} parent=79 // pred_fallthru
          _
      $region80: #{tpu_custom_call.1} parent=5 // pred_fallthru
        _
      %p2815 = scmp.le.s32.totalorder 2, %s32
      // Predicated region
      $region113: #{tpu_custom_call.1} parent=5 // pred_check
        %p2816 = pneg %p2815
      $region114: #{tpu_custom_call.1} parent=5 // pred_check_branch
        %2818 = sbr.rel (%p2816) target = $region116
      $region115: #{tpu_custom_call.1} parent=5 // pred_region
        %s2819 = ssub.s32 %s32, 2
        // Predicated region
        $region117: #{tpu_custom_call.1} parent=115 // pred_check
          %p2820 = pneg %p427
        $region118: #{tpu_custom_call.1} parent=115 // pred_check_branch
          %2822 = sbr.rel (%p2820) target = $region120
        $region119: #{tpu_custom_call.1} parent=115 // pred_region
          %s2823 = sand.u32 %s412, 1
          %s2824 = scalar_lea.sflag [#allocation6], %s2823
          %s2825 = sand.u32 %s412, 1
          %s2826 = smul.addr %s2825, 16
          %s2827 = scalar_lea.vmem [#allocation16], %s2826
          %2829 = dma.done %s2824, 256
        $region120: #{tpu_custom_call.1} parent=115 // pred_fallthru
          _
      $region116: #{tpu_custom_call.1} parent=5 // pred_fallthru
        _
    $region6: #{tpu_custom_call.1} parent=1 // loop_footer
      %s36 = sadd.s32 1, %s32
    $region7: #{tpu_custom_call.1} parent=1 // loop_footer_branch
      %31 = sbr.rel target = $region3
    $region8: #{tpu_custom_call.1} parent=1 // loop_exit
      _
    %2830 = vsyncpa [#allocation5], 1
    %s2831 = scalar_lea.sflag [#allocation5], 1
    %2832 = vsyncpa %s2831, 1
    %2833 = vsyncpa [#allocation8], 1
    %s2834 = scalar_lea.sflag [#allocation8], 1
    %2835 = vsyncpa %s2834, 1
    %2836 = vsyncpa [#allocation11], 1
    %2837 = vsyncpa [#allocation14], 1
    %2838 = vsyncpa [#allocation6], 1
    %s2839 = scalar_lea.sflag [#allocation6], 1
    %2840 = vsyncpa %s2839, 1

</llo_original>
